<compile_context>
chip_gen: v7x
topology: tpu7x:2x2x1
jax: 0.10.0
libtpu: 0.0.40
codegen_flags: <defaults>
</compile_context>

<pallas_src>
import functools

import jax
import jax.numpy as jnp
from jax.experimental import pallas as pl
from jax.experimental.pallas import tpu as pltpu


def _dirac_conv_kernel(x_ref, w_ref, b_ref, o_ref, acc_ref, *, H, W, K):
    """One batch block per grid step.

    x_ref  : (Nb, H+K-1, W, K*Cin)  kw-folded input (W halo already resolved)
    w_ref  : (K, K*Cin, Cout_pad)   effective weight, lane-dense Cout
    b_ref  : (1, Cout_pad)          bias (zeros in the padded lanes), fp32
    o_ref  : (Nb*H*W, Cout_pad)     flattened, lane-dense output rows
    acc_ref: (Nb*H*W, Cout_pad)     fp32 VMEM accumulator scratch
    """
    nb = x_ref.shape[0]
    kc = x_ref.shape[-1]          # K * Cin (contraction depth)
    m = nb * H * W                # matmul M dimension

    # K MXU matmuls with contraction depth K*Cin, accumulated in fp32.
    # The H slice is along an untiled axis (address offset only); the reshape
    # is layout-preserving because W % 8 == 0 (sublane tiling unchanged).
    for kh in range(K):
        patch = x_ref[:, kh:kh + H, :, :].reshape(m, kc)
        part = jnp.dot(patch, w_ref[kh], preferred_element_type=jnp.float32)
        if kh == 0:
            acc_ref[...] = part
        else:
            acc_ref[...] += part

    y = acc_ref[...] + b_ref[...]                              # bias broadcast
    o_ref[...] = jnp.maximum(y, 0.0).astype(o_ref.dtype)       # fused ReLU, full-lane store


def _pick_batch_block(N, Hp, W, kc, HW, cout_pad, itemsize,
                      vmem_budget_bytes=4 * 1024 * 1024):
    """Largest Nb dividing N whose double-buffered working set fits the budget,
    capped so N >= 2 keeps at least 2 grid steps (megacore sharding on v7x)."""
    def rup(a, m):
        return -(-a // m) * m
    in_img = Hp * rup(W, 8) * rup(kc, 128) * itemsize          # (8,128)-tiled VMEM bytes
    out_img = rup(HW, 8) * cout_pad * itemsize
    acc_img = rup(HW, 8) * cout_pad * 4                        # fp32 scratch
    per_img = 2 * in_img + 2 * out_img + acc_img               # double-buffered in/out
    nb = max(1, min(N, vmem_budget_bytes // max(per_img, 1)))
    if N >= 2:
        nb = min(nb, N // 2)
    while N % nb:
        nb -= 1
    return nb


def dirac_conv2d(x_nchw, w_oikk, b, identity_scale, norm_scale, compute_dtype=None):
    """DiracConv2d forward.  x_nchw: (N,Cin,H,W); w_oikk: (Cout,Cin,K,K); b: (Cout,)."""
    N, Cin, H, W = x_nchw.shape
    Cout, _, K, _ = w_oikk.shape
    assert K % 2 == 1, "padding=K//2 only matches 'same' conv semantics for odd K"
    pad = K // 2
    if compute_dtype is None:
        compute_dtype = x_nchw.dtype       # use jnp.bfloat16 on v6e/v7x for MXU peak

    # --- parameter glue (plain JAX): effective conv weight -------------------
    w_flat = w_oikk.reshape(Cout, -1)
    norm = jnp.maximum(jnp.sqrt(jnp.sum(w_flat * w_flat, axis=-1, keepdims=True)), 1e-12)
    w_normed = (w_flat / norm).reshape(w_oikk.shape)
    eff_w = identity_scale * w_oikk + norm_scale * w_normed     # (Cout, Cin, K, K)

    # Lane-dense Cout and kw-folded contraction layout: (K, K*Cin, Cout_pad).
    cout_pad = -(-Cout // 128) * 128
    kc = K * Cin
    w_k = jnp.transpose(eff_w, (2, 3, 1, 0)).reshape(K, kc, Cout)   # [kh, kw*Cin+ci, co]
    w_k = jnp.pad(w_k, ((0, 0), (0, 0), (0, cout_pad - Cout))).astype(compute_dtype)
    b_pad = jnp.pad(b, (0, cout_pad - Cout)).reshape(1, cout_pad).astype(jnp.float32)

    # --- input glue: transpose + zero-pad + fold kw into channels ------------
    # Slices + concat fuse with the transpose/pad into a single XLA copy that
    # writes x_cat; the padded intermediate never round-trips HBM on its own.
    x_nhwc = jnp.transpose(x_nchw, (0, 2, 3, 1)).astype(compute_dtype)   # (N,H,W,Cin)
    x_padded = jnp.pad(x_nhwc, ((0, 0), (pad, pad), (pad, pad), (0, 0)))
    x_cat = jnp.concatenate(
        [x_padded[:, :, kw:kw + W, :] for kw in range(K)], axis=-1)      # (N,Hp,W,K*Cin)
    Hp = H + 2 * pad
    HW = H * W

    Nb = _pick_batch_block(N, Hp, W, kc, HW, cout_pad,
                           jnp.dtype(compute_dtype).itemsize)

    kernel = functools.partial(_dirac_conv_kernel, H=H, W=W, K=K)

    out = pl.pallas_call(
        kernel,
        out_shape=jax.ShapeDtypeStruct((N * HW, cout_pad), x_nchw.dtype),
        grid_spec=pltpu.PrefetchScalarGridSpec(
            num_scalar_prefetch=0,
            grid=(N // Nb,),
            in_specs=[
                pl.BlockSpec((Nb, Hp, W, kc), lambda n: (n, 0, 0, 0)),
                pl.BlockSpec((K, kc, cout_pad), lambda n: (0, 0, 0)),   # not re-DMA'd
                pl.BlockSpec((1, cout_pad), lambda n: (0, 0)),
            ],
            out_specs=pl.BlockSpec((Nb * HW, cout_pad), lambda n: (n, 0)),
            scratch_shapes=[pltpu.VMEM((Nb * HW, cout_pad), jnp.float32)],
        ),
        compiler_params=pltpu.CompilerParams(
            dimension_semantics=("parallel",)),
    )(x_cat, w_k, b_pad)

    out = out.reshape(N, H, W, cout_pad)[..., :Cout]            # drop padded lanes
    return jnp.transpose(out, (0, 3, 1, 2))                     # NHWC -> NCHW


if __name__ == "__main__":
    key = jax.random.PRNGKey(0)
    k_x, k_w, k_b = jax.random.split(key, 3)

    N, Cin, H, W = 2, 4, 16, 16
    Cout, K = 8, 3

    x = jax.random.uniform(k_x, (N, Cin, H, W), dtype=jnp.float32)
    # Deterministic parameter init mirroring the module's __init__ shapes:
    w = jax.random.uniform(k_w, (Cout, Cin, K, K), dtype=jnp.float32)   # torch.rand
    b = jax.random.uniform(k_b, (Cout,), dtype=jnp.float32)             # torch.rand
    identity_scale = jnp.ones((Cout, 1, 1, 1), dtype=jnp.float32)
    norm_scale = jnp.full((Cout, 1, 1, 1), 0.1, dtype=jnp.float32)

    y = dirac_conv2d(x, w, b, identity_scale, norm_scale)
    jax.block_until_ready(y)

    # Pure-JAX reference.
    w_flat = w.reshape(Cout, -1)
    w_n = (w_flat / jnp.maximum(
        jnp.linalg.norm(w_flat, axis=-1, keepdims=True), 1e-12)).reshape(w.shape)
    eff = identity_scale * w + norm_scale * w_n
    ref = jax.lax.conv_general_dilated(
        x, eff, window_strides=(1, 1), padding="SAME",
        dimension_numbers=("NCHW", "OIHW", "NCHW"))
    ref = jnp.maximum(ref + b[None, :, None, None], 0.0)
    assert y.shape == (N, Cout, H, W)
    assert jnp.allclose(y, ref, atol=1e-4, rtol=1e-4), float(jnp.max(jnp.abs(y - ref)))

    print("KERNEL_OK")
</pallas_src>

<mosaic_0001>
module attributes {stable_mosaic.version = 11 : i64} {
  func.func @_dirac_conv_kernel(%arg0: i32, %arg1: memref<1x18x16x12xf32, #tpu.memory_space<vmem>>, %arg2: memref<3x12x128xf32, #tpu.memory_space<vmem>>, %arg3: memref<1x128xf32, #tpu.memory_space<vmem>>, %arg4: memref<256x128xf32, #tpu.memory_space<vmem>>, %arg5: memref<256x128xf32, #tpu.memory_space<vmem>>) attributes {dimension_semantics = [#tpu.dimension_semantics<parallel>], iteration_bounds = array<i64: 2>, scalar_prefetch = 0 : i64, scratch_operands = 1 : i64, tpu.core_type = #tpu.core_type<tc>, window_params = [{transform_indices = @transform_0, window_bounds = array<i64: 1, 18, 16, 12>}, {pipeline_mode = #tpu.pipeline_mode<synchronous>, transform_indices = @transform_1, window_bounds = array<i64: 3, 12, 128>}, {pipeline_mode = #tpu.pipeline_mode<synchronous>, transform_indices = @transform_2, window_bounds = array<i64: 1, 128>}, {transform_indices = @transform_3, window_bounds = array<i64: 256, 128>}]} {
    %c0 = arith.constant 0 : index
    %c0_0 = arith.constant 0 : index
    %c0_1 = arith.constant 0 : index
    %c0_2 = arith.constant 0 : index
    %0 = vector.load %arg1[%c0, %c0_0, %c0_1, %c0_2] : memref<1x18x16x12xf32, #tpu.memory_space<vmem>>, vector<1x16x16x12xf32>
    %1 = vector.shape_cast %0 : vector<1x16x16x12xf32> to vector<256x12xf32>
    %c0_3 = arith.constant 0 : index
    %c0_4 = arith.constant 0 : index
    %c0_5 = arith.constant 0 : index
    %2 = vector.load %arg2[%c0_3, %c0_4, %c0_5] : memref<3x12x128xf32, #tpu.memory_space<vmem>>, vector<1x12x128xf32>
    %3 = vector.shape_cast %2 : vector<1x12x128xf32> to vector<12x128xf32>
    %cst = arith.constant dense<0.000000e+00> : vector<256x128xf32>
    %4 = tpu.matmul %1, %3, %cst {dimension_numbers = #tpu.dot_dimension_numbers<[1], [0], [0], [1], [0, 0, 1, 1], [], []>} : vector<256x12xf32>, vector<12x128xf32>, vector<256x128xf32> -> vector<256x128xf32>
    %c0_6 = arith.constant 0 : index
    %c0_7 = arith.constant 0 : index
    %5 = vector.load %arg5[%c0_6, %c0_7] : memref<256x128xf32, #tpu.memory_space<vmem>>, vector<256x128xf32>
    tpu.vector_store %arg5[%c0_6, %c0_7], %4 {strides = array<i32>} : memref<256x128xf32, #tpu.memory_space<vmem>>, vector<256x128xf32>,
    %c0_8 = arith.constant 0 : index
    %c1 = arith.constant 1 : index
    %c0_9 = arith.constant 0 : index
    %c0_10 = arith.constant 0 : index
    %6 = vector.load %arg1[%c0_8, %c1, %c0_9, %c0_10] : memref<1x18x16x12xf32, #tpu.memory_space<vmem>>, vector<1x16x16x12xf32>
    %7 = vector.shape_cast %6 : vector<1x16x16x12xf32> to vector<256x12xf32>
    %c1_11 = arith.constant 1 : index
    %c0_12 = arith.constant 0 : index
    %c0_13 = arith.constant 0 : index
    %8 = vector.load %arg2[%c1_11, %c0_12, %c0_13] : memref<3x12x128xf32, #tpu.memory_space<vmem>>, vector<1x12x128xf32>
    %9 = vector.shape_cast %8 : vector<1x12x128xf32> to vector<12x128xf32>
    %cst_14 = arith.constant dense<0.000000e+00> : vector<256x128xf32>
    %10 = tpu.matmul %7, %9, %cst_14 {dimension_numbers = #tpu.dot_dimension_numbers<[1], [0], [0], [1], [0, 0, 1, 1], [], []>} : vector<256x12xf32>, vector<12x128xf32>, vector<256x128xf32> -> vector<256x128xf32>
    %c0_15 = arith.constant 0 : index
    %c0_16 = arith.constant 0 : index
    %11 = vector.load %arg5[%c0_15, %c0_16] : memref<256x128xf32, #tpu.memory_space<vmem>>, vector<256x128xf32>
    %12 = arith.addf %11, %10 : vector<256x128xf32>
    %c0_17 = arith.constant 0 : index
    %c0_18 = arith.constant 0 : index
    %13 = vector.load %arg5[%c0_17, %c0_18] : memref<256x128xf32, #tpu.memory_space<vmem>>, vector<256x128xf32>
    tpu.vector_store %arg5[%c0_17, %c0_18], %12 {strides = array<i32>} : memref<256x128xf32, #tpu.memory_space<vmem>>, vector<256x128xf32>,
    %c0_19 = arith.constant 0 : index
    %c2 = arith.constant 2 : index
    %c0_20 = arith.constant 0 : index
    %c0_21 = arith.constant 0 : index
    %14 = vector.load %arg1[%c0_19, %c2, %c0_20, %c0_21] : memref<1x18x16x12xf32, #tpu.memory_space<vmem>>, vector<1x16x16x12xf32>
    %15 = vector.shape_cast %14 : vector<1x16x16x12xf32> to vector<256x12xf32>
    %c2_22 = arith.constant 2 : index
    %c0_23 = arith.constant 0 : index
    %c0_24 = arith.constant 0 : index
    %16 = vector.load %arg2[%c2_22, %c0_23, %c0_24] : memref<3x12x128xf32, #tpu.memory_space<vmem>>, vector<1x12x128xf32>
    %17 = vector.shape_cast %16 : vector<1x12x128xf32> to vector<12x128xf32>
    %cst_25 = arith.constant dense<0.000000e+00> : vector<256x128xf32>
    %18 = tpu.matmul %15, %17, %cst_25 {dimension_numbers = #tpu.dot_dimension_numbers<[1], [0], [0], [1], [0, 0, 1, 1], [], []>} : vector<256x12xf32>, vector<12x128xf32>, vector<256x128xf32> -> vector<256x128xf32>
    %c0_26 = arith.constant 0 : index
    %c0_27 = arith.constant 0 : index
    %19 = vector.load %arg5[%c0_26, %c0_27] : memref<256x128xf32, #tpu.memory_space<vmem>>, vector<256x128xf32>
    %20 = arith.addf %19, %18 : vector<256x128xf32>
    %c0_28 = arith.constant 0 : index
    %c0_29 = arith.constant 0 : index
    %21 = vector.load %arg5[%c0_28, %c0_29] : memref<256x128xf32, #tpu.memory_space<vmem>>, vector<256x128xf32>
    tpu.vector_store %arg5[%c0_28, %c0_29], %20 {strides = array<i32>} : memref<256x128xf32, #tpu.memory_space<vmem>>, vector<256x128xf32>,
    %c0_30 = arith.constant 0 : index
    %c0_31 = arith.constant 0 : index
    %22 = vector.load %arg5[%c0_30, %c0_31] : memref<256x128xf32, #tpu.memory_space<vmem>>, vector<256x128xf32>
    %c0_32 = arith.constant 0 : index
    %c0_33 = arith.constant 0 : index
    %23 = vector.load %arg3[%c0_32, %c0_33] : memref<1x128xf32, #tpu.memory_space<vmem>>, vector<1x128xf32>
    %24 = vector.broadcast %23 : vector<1x128xf32> to vector<256x128xf32>
    %25 = arith.addf %22, %24 : vector<256x128xf32>
    %cst_34 = arith.constant 0.000000e+00 : f32
    %26 = vector.broadcast %cst_34 : f32 to vector<256x128xf32>
    %27 = arith.maximumf %25, %26 : vector<256x128xf32>
    %c0_35 = arith.constant 0 : index
    %c0_36 = arith.constant 0 : index
    %28 = vector.load %arg4[%c0_35, %c0_36] : memref<256x128xf32, #tpu.memory_space<vmem>>, vector<256x128xf32>
    tpu.vector_store %arg4[%c0_35, %c0_36], %27 {strides = array<i32>} : memref<256x128xf32, #tpu.memory_space<vmem>>, vector<256x128xf32>,
    return
  }
  func.func @transform_0(%arg0: i32) -> (i32, i32, i32, i32) {
    %c0_i32 = arith.constant 0 : i32
    %c0_i32_0 = arith.constant 0 : i32
    %c0_i32_1 = arith.constant 0 : i32
    %c0_i32_2 = arith.constant 0 : i32
    return %arg0, %c0_i32, %c0_i32_0, %c0_i32_1 : i32, i32, i32, i32
  }
  func.func @transform_1(%arg0: i32) -> (i32, i32, i32) {
    %c0_i32 = arith.constant 0 : i32
    %c0_i32_0 = arith.constant 0 : i32
    %c0_i32_1 = arith.constant 0 : i32
    %c0_i32_2 = arith.constant 0 : i32
    return %c0_i32, %c0_i32_0, %c0_i32_1 : i32, i32, i32
  }
  func.func @transform_2(%arg0: i32) -> (i32, i32) {
    %c0_i32 = arith.constant 0 : i32
    %c0_i32_0 = arith.constant 0 : i32
    %c0_i32_1 = arith.constant 0 : i32
    return %c0_i32, %c0_i32_0 : i32, i32
  }
  func.func @transform_3(%arg0: i32) -> (i32, i32) {
    %c0_i32 = arith.constant 0 : i32
    %c0_i32_0 = arith.constant 0 : i32
    return %arg0, %c0_i32 : i32, i32
  }
}

</mosaic_0001>

<llo_original>
// kernel: tpu_custom_call.1
$region0: #{tpu_custom_call.1}
  #allocation0 [shape = 'u32[]', space=smem, size = 0x4, offset = 0x4, fixed_abs, tag = 'smem constant byte address 0x4 - core index']
  #allocation1 [shape = 'u32[144,128]{1,0:T(1,128)}', space=vmem, size = 0x12000, scoped, tag = 'internal scratch']
  #allocation2 [shape = 'f32[256,128]{1,0:T(8,128)}', space=vmem, size = 0x20000, scoped, tag = 'scratch operand']
  %s0 = inlined_call_operand.vmem [shape: f32[2,18,16,12], index: 0, kind: input, shape index: {}]
  %s1 = inlined_call_operand.vmem [shape: f32[3,12,128], index: 1, kind: input, shape index: {}]
  %s2 = inlined_call_operand.vmem [shape: f32[1,128], index: 2, kind: input, shape index: {}]
  %s3 = inlined_call_operand.hbm [shape: f32[512,128], index: 3, kind: output, shape index: {}]
  %s4 = sld [smem:[#allocation0]]
  $region45: #{tpu_custom_call.1} parent=0
    _
  %s6 = ssub.s32 1, %s4
  %s7 = scalar_select 0, %s6, %s4
  $region1: #{tpu_custom_call.1} parent=0
    #allocation3 [shape = 'u8[262144]{0}', space=vmem, size = 0x40000, scoped, tag = 'output window, operand 0']
    #allocation4 [shape = 's32[2]{0}', space=sflag, size = 0x8, scoped, tag = 'scoped memory for tpu_custom_call.1']
    %8 = vsyncpa [#allocation4], 0
    %s9 = scalar_lea.sflag [#allocation4], 1
    %10 = vsyncpa %s9, 0
    loop: start=0, step=1, limit=4
    $region2: #{tpu_custom_call.1} parent=1 // loop_pre_header
      _
    $region3: #{tpu_custom_call.1} parent=1 // loop_header
      %s12 = sphi 0, %s16
      %p13 = scmp.ge.s32.totalorder %s12, 4
      %s22 = sphi 0, %s24
      %s25 = sphi 0, %s22
      %s26 = sphi 0, %s25
      %s42 = sphi 0, %s26
      %s46 = sphi 0, %s46
      %s48 = sphi 0, %s46
      %s49 = sphi 0, %s48
      %s63 = sphi 0, %s49
      %s67 = sphi 0, %s67
      %s69 = sphi 0, %s67
      %s70 = sphi 0, %s69
      %s84 = sphi 0, %s70
      %s90 = sphi 0, %s92
      %s93 = sphi 0, %s90
      %s94 = sphi 0, %s93
      %s110 = sphi 0, %s94
    $region4: #{tpu_custom_call.1} parent=1 // loop_header_branch
      %15 = sbr.rel (%p13) target = $region8
    $region5: #{tpu_custom_call.1} parent=1 // loop_body
      %s17 = ssub.s32 %s12, 1
      %s18 = ssub.s32 %s12, 2
      %s19 = sadd.s32 %s12, 1
      %s20 = ssub.s32 %s12, %s19
      %p21 = scmp.eq.s32.totalorder %s20, 0
      %s23 = sadd.s32 %s22, 1
      %s24 = scalar_select %p21, %s22, %s23
      %p27 = pneg %p21
      %p28 = scmp.eq.s32.totalorder %s12, 1
      %p29 = por %p27, %p28
      %p30 = scmp.ne.s32.totalorder %s22, %s25
      %p31 = scmp.eq.s32.totalorder %s12, 0
      %p32 = por %p30, %p31
      %p33 = scmp.ne.s32.totalorder %s22, %s25
      %p34 = scmp.eq.s32.totalorder %s17, 1
      %p35 = por %p33, %p34
      %p36 = scmp.ne.s32.totalorder %s25, %s26
      %p37 = scmp.eq.s32.totalorder %s17, 0
      %p38 = por %p36, %p37
      %p39 = scmp.ne.s32.totalorder %s25, %s26
      %p40 = scmp.eq.s32.totalorder %s18, 1
      %p41 = por %p39, %p40
      %p43 = scmp.ne.s32.totalorder %s26, %s42
      %p44 = scmp.eq.s32.totalorder %s18, 0
      %p45 = por %p43, %p44
      %s47 = sadd.s32 %s46, 1
      %p50 = scmp.eq.s32.totalorder %s12, 1
      %p51 = scmp.ne.s32.totalorder %s46, %s48
      %p52 = scmp.eq.s32.totalorder %s12, 0
      %p53 = por %p51, %p52
      %p54 = scmp.ne.s32.totalorder %s46, %s48
      %p55 = scmp.eq.s32.totalorder %s17, 1
      %p56 = por %p54, %p55
      %p57 = scmp.ne.s32.totalorder %s48, %s49
      %p58 = scmp.eq.s32.totalorder %s17, 0
      %p59 = por %p57, %p58
      %p60 = scmp.ne.s32.totalorder %s48, %s49
      %p61 = scmp.eq.s32.totalorder %s18, 1
      %p62 = por %p60, %p61
      %p64 = scmp.ne.s32.totalorder %s49, %s63
      %p65 = scmp.eq.s32.totalorder %s18, 0
      %p66 = por %p64, %p65
      %s68 = sadd.s32 %s67, 1
      %p71 = scmp.eq.s32.totalorder %s12, 1
      %p72 = scmp.ne.s32.totalorder %s67, %s69
      %p73 = scmp.eq.s32.totalorder %s12, 0
      %p74 = por %p72, %p73
      %p75 = scmp.ne.s32.totalorder %s67, %s69
      %p76 = scmp.eq.s32.totalorder %s17, 1
      %p77 = por %p75, %p76
      %p78 = scmp.ne.s32.totalorder %s69, %s70
      %p79 = scmp.eq.s32.totalorder %s17, 0
      %p80 = por %p78, %p79
      %p81 = scmp.ne.s32.totalorder %s69, %s70
      %p82 = scmp.eq.s32.totalorder %s18, 1
      %p83 = por %p81, %p82
      %p85 = scmp.ne.s32.totalorder %s70, %s84
      %p86 = scmp.eq.s32.totalorder %s18, 0
      %p87 = por %p85, %p86
      %s88 = ssub.s32 %s12, %s19
      %p89 = scmp.eq.s32.totalorder %s88, 0
      %s91 = sadd.s32 %s90, 1
      %s92 = scalar_select %p89, %s90, %s91
      %p95 = pneg %p89
      %p96 = scmp.eq.s32.totalorder %s12, 1
      %p97 = por %p95, %p96
      %p98 = scmp.ne.s32.totalorder %s90, %s93
      %p99 = scmp.eq.s32.totalorder %s12, 0
      %p100 = por %p98, %p99
      %p101 = scmp.ne.s32.totalorder %s90, %s93
      %p102 = scmp.eq.s32.totalorder %s17, 1
      %p103 = por %p101, %p102
      %p104 = scmp.ne.s32.totalorder %s93, %s94
      %p105 = scmp.eq.s32.totalorder %s17, 0
      %p106 = por %p104, %p105
      %p107 = scmp.ne.s32.totalorder %s93, %s94
      %p108 = scmp.eq.s32.totalorder %s18, 1
      %p109 = por %p107, %p108
      %p111 = scmp.ne.s32.totalorder %s94, %s110
      %p112 = scmp.eq.s32.totalorder %s18, 0
      %p113 = por %p111, %p112
      %p114 = scmp.le.s32.totalorder 1, %s12
      %p115 = scmp.lt.s32.totalorder %s12, 3
      %p116 = pnand %p114, %p115
      %p117 = pneg %p116
      // Predicated region
      $region9: #{tpu_custom_call.1} parent=5 // pred_check
        _
      $region10: #{tpu_custom_call.1} parent=5 // pred_check_branch
        %119 = sbr.rel (%p116) target = $region12
      $region11: #{tpu_custom_call.1} parent=5 // pred_region
        %s120 = ssub.s32 %s12, 1
        // Predicated region
        $region13: #{tpu_custom_call.1} parent=11 // pred_check
          %p121 = pneg %p59
        $region14: #{tpu_custom_call.1} parent=11 // pred_check_branch
          %123 = sbr.rel (%p121) target = $region16
        $region15: #{tpu_custom_call.1} parent=11 // pred_region
          _
        $region16: #{tpu_custom_call.1} parent=11 // pred_fallthru
          _
        // Predicated region
        $region17: #{tpu_custom_call.1} parent=11 // pred_check
          %p124 = pneg %p80
        $region18: #{tpu_custom_call.1} parent=11 // pred_check_branch
          %126 = sbr.rel (%p124) target = $region20
        $region19: #{tpu_custom_call.1} parent=11 // pred_region
          _
        $region20: #{tpu_custom_call.1} parent=11 // pred_fallthru
          _
      $region12: #{tpu_custom_call.1} parent=5 // pred_fallthru
        _
      %p127 = scmp.lt.s32.totalorder %s12, 2
      // Predicated region
      $region21: #{tpu_custom_call.1} parent=5 // pred_check
        %p128 = pneg %p127
      $region22: #{tpu_custom_call.1} parent=5 // pred_check_branch
        %130 = sbr.rel (%p128) target = $region24
      $region23: #{tpu_custom_call.1} parent=5 // pred_region
        // Predicated region
        $region25: #{tpu_custom_call.1} parent=23 // pred_check
          %p131 = pneg %p32
        $region26: #{tpu_custom_call.1} parent=23 // pred_check_branch
          %133 = sbr.rel (%p131) target = $region28
        $region27: #{tpu_custom_call.1} parent=23 // pred_region
          %p134 = scmp.lt.s32.totalorder %s12, 1
          %s135 = scalar_select %p134, %s12, 1
          %s136 = smul.addr %s135, 36
          %s137 = smul.addr %s136, 8
          %s138 = scalar_lea.vmem %s0, %s137
        $region28: #{tpu_custom_call.1} parent=23 // pred_fallthru
          _
      $region24: #{tpu_custom_call.1} parent=5 // pred_fallthru
        _
      %p139 = scmp.le.s32.totalorder 1, %s12
      %p140 = scmp.lt.s32.totalorder %s12, 3
      %p141 = pnand %p139, %p140
      %p142 = pneg %p141
      // Predicated region
      $region29: #{tpu_custom_call.1} parent=5 // pred_check
        _
      $region30: #{tpu_custom_call.1} parent=5 // pred_check_branch
        %144 = sbr.rel (%p141) target = $region32
      $region31: #{tpu_custom_call.1} parent=5 // pred_region
        %s145 = ssub.s32 %s12, 1
        %p146 = scmp.lt.s32.totalorder %s17, 1
        %s147 = scalar_select %p146, %s17, 1
        %s148 = smul.addr %s147, 36
        %s149 = smul.addr %s148, 8
        %s150 = scalar_lea.vmem %s0, %s149
        %p151 = pneg %p38
        %p152 = pneg %p35
        %p153 = pneg %p59
        %p154 = pneg %p56
        %p155 = pneg %p80
        %p156 = pneg %p77
        %p157 = pneg %p106
        %p158 = pneg %p103
        %s159 = sand.u32 %s93, 1
        %s160 = scalar_lea.sflag [#allocation4], %s159
        %s161 = sand.u32 %s93, 1
        %s162 = smul.addr %s161, 256
        %s163 = scalar_lea.vmem [#allocation3], %s162
        %p164 = scmp.lt.s32.totalorder %s17, 1
        %s165 = scalar_select %p164, %s17, 1
        %s166 = smul.addr %s165, 36
        %s167 = smul.addr %s166, 8
        %s168 = scalar_lea.vmem %s0, %s167
        %s169 = smul.u32 32, %s17
        %v170 = vld [vmem:[%s168] sm:$0xff]
        %v171 = vld [vmem:[%s168 + $0x8] sm:$0xff]
        %v172 = vld [vmem:[%s168 + $0x10] sm:$0xff]
        %v173 = vld [vmem:[%s168 + $0x18] sm:$0xff]
        %v174 = vld [vmem:[%s168 + $0x20] sm:$0xff]
        %v175 = vld [vmem:[%s168 + $0x28] sm:$0xff]
        %v176 = vld [vmem:[%s168 + $0x30] sm:$0xff]
        %v177 = vld [vmem:[%s168 + $0x38] sm:$0xff]
        %v178 = vld [vmem:[%s168 + $0x40] sm:$0xff]
        %v179 = vld [vmem:[%s168 + $0x48] sm:$0xff]
        %v180 = vld [vmem:[%s168 + $0x50] sm:$0xff]
        %v181 = vld [vmem:[%s168 + $0x58] sm:$0xff]
        %v182 = vld [vmem:[%s168 + $0x60] sm:$0xff]
        %v183 = vld [vmem:[%s168 + $0x68] sm:$0xff]
        %v184 = vld [vmem:[%s168 + $0x70] sm:$0xff]
        %v185 = vld [vmem:[%s168 + $0x78] sm:$0xff]
        %v186 = vld [vmem:[%s168 + $0x80] sm:$0xff]
        %v187 = vld [vmem:[%s168 + $0x88] sm:$0xff]
        %v188 = vld [vmem:[%s168 + $0x90] sm:$0xff]
        %v189 = vld [vmem:[%s168 + $0x98] sm:$0xff]
        %v190 = vld [vmem:[%s168 + $0xa0] sm:$0xff]
        %v191 = vld [vmem:[%s168 + $0xa8] sm:$0xff]
        %v192 = vld [vmem:[%s168 + $0xb0] sm:$0xff]
        %v193 = vld [vmem:[%s168 + $0xb8] sm:$0xff]
        %v194 = vld [vmem:[%s168 + $0xc0] sm:$0xff]
        %v195 = vld [vmem:[%s168 + $0xc8] sm:$0xff]
        %v196 = vld [vmem:[%s168 + $0xd0] sm:$0xff]
        %v197 = vld [vmem:[%s168 + $0xd8] sm:$0xff]
        %v198 = vld [vmem:[%s168 + $0xe0] sm:$0xff]
        %v199 = vld [vmem:[%s168 + $0xe8] sm:$0xff]
        %v200 = vld [vmem:[%s168 + $0xf0] sm:$0xff]
        %v201 = vld [vmem:[%s168 + $0xf8] sm:$0xff]
        %v202 = vld [vmem:[%s1] sm:$0xff]
        %v203 = vld [vmem:[%s1 + $0x8] sm:$0xf]
        %vm204 = vcmask 97280
        %v206 = vsel %vm204, %v170, 0
        %v209 = vsel %vm204, %v171, 0
        %v212 = vsel %vm204, %v172, 0
        %v215 = vsel %vm204, %v173, 0
        %v218 = vsel %vm204, %v174, 0
        %v221 = vsel %vm204, %v175, 0
        %v224 = vsel %vm204, %v176, 0
        %v227 = vsel %vm204, %v177, 0
        %v230 = vsel %vm204, %v178, 0
        %v233 = vsel %vm204, %v179, 0
        %v236 = vsel %vm204, %v180, 0
        %v239 = vsel %vm204, %v181, 0
        %v242 = vsel %vm204, %v182, 0
        %v245 = vsel %vm204, %v183, 0
        %v248 = vsel %vm204, %v184, 0
        %v251 = vsel %vm204, %v185, 0
        %v254 = vsel %vm204, %v186, 0
        %v257 = vsel %vm204, %v187, 0
        %v260 = vsel %vm204, %v188, 0
        %v263 = vsel %vm204, %v189, 0
        %v266 = vsel %vm204, %v190, 0
        %v269 = vsel %vm204, %v191, 0
        %v272 = vsel %vm204, %v192, 0
        %v275 = vsel %vm204, %v193, 0
        %v278 = vsel %vm204, %v194, 0
        %v281 = vsel %vm204, %v195, 0
        %v284 = vsel %vm204, %v196, 0
        %v287 = vsel %vm204, %v197, 0
        %v290 = vsel %vm204, %v198, 0
        %v293 = vsel %vm204, %v199, 0
        %v296 = vsel %vm204, %v200, 0
        %v299 = vsel %vm204, %v201, 0
        %vm301 = vcmask 1043456
        %v303 = vsel %vm301, %v203, 0
        %305 = vmatprep.subr.mxu0 0.0
        %306 = vmatpush1.msra.mxu0 %v202
        %307 = vmatprep.subr.mxu0 0.0
        %308 = vmatpush1.msra.mxu0 %v303
        %309 = vmatprep.subr.mxu0 0.0
        %310 = vmatpush1.msra.mxu0 0.0
        %311 = vmatprep.subr.mxu0 0.0
        %312 = vmatpush1.msra.mxu0 0.0
        %313 = vmatprep.subr.mxu0 0.0
        %314 = vmatpush1.msra.mxu0 0.0
        %315 = vmatprep.subr.mxu0 0.0
        %316 = vmatpush1.msra.mxu0 0.0
        %317 = vmatprep.subr.mxu0 0.0
        %318 = vmatpush1.msra.mxu0 0.0
        %319 = vmatprep.subr.mxu0 0.0
        %320 = vmatpush1.msra.mxu0 0.0
        %321 = vmatprep.subr.mxu0 0.0
        %322 = vmatpush1.msra.mxu0 0.0
        %323 = vmatprep.subr.mxu0 0.0
        %324 = vmatpush1.msra.mxu0 0.0
        %325 = vmatprep.subr.mxu0 0.0
        %326 = vmatpush1.msra.mxu0 0.0
        %327 = vmatprep.subr.mxu0 0.0
        %328 = vmatpush1.msra.mxu0 0.0
        %329 = vmatprep.subr.mxu0 0.0
        %330 = vmatpush1.msra.mxu0 0.0
        %331 = vmatprep.subr.mxu0 0.0
        %332 = vmatpush1.msra.mxu0 0.0
        %333 = vmatprep.subr.mxu0 0.0
        %334 = vmatpush1.msra.mxu0 0.0
        %335 = vmatprep.subr.mxu0 0.0
        %336 = vmatpush1.msra.mxu0 0.0
        %337 = vmatprep.subr.mxu0 0.0
        %338 = vmatpush1.msra.mxu0 0.0
        %339 = vmatprep.subr.mxu0 0.0
        %340 = vmatpush1.msra.mxu0 0.0
        %341 = vmatprep.subr.mxu0 0.0
        %342 = vmatpush1.msra.mxu0 0.0
        %343 = vmatprep.subr.mxu0 0.0
        %344 = vmatpush1.msra.mxu0 0.0
        %345 = vmatprep.subr.mxu0 0.0
        %346 = vmatpush1.msra.mxu0 0.0
        %347 = vmatprep.subr.mxu0 0.0
        %348 = vmatpush1.msra.mxu0 0.0
        %349 = vmatprep.subr.mxu0 0.0
        %350 = vmatpush1.msra.mxu0 0.0
        %351 = vmatprep.subr.mxu0 0.0
        %352 = vmatpush1.msra.mxu0 0.0
        %353 = vmatprep.subr.mxu0 0.0
        %354 = vmatpush1.msra.mxu0 0.0
        %355 = vmatprep.subr.mxu0 0.0
        %356 = vmatpush1.msra.mxu0 0.0
        %357 = vmatprep.subr.mxu0 0.0
        %358 = vmatpush1.msra.mxu0 0.0
        %359 = vmatprep.subr.mxu0 0.0
        %360 = vmatpush1.msra.mxu0 0.0
        %361 = vmatprep.subr.mxu0 0.0
        %362 = vmatpush1.msra.mxu0 0.0
        %363 = vmatprep.subr.mxu0 0.0
        %364 = vmatpush1.msra.mxu0 0.0
        %365 = vmatprep.subr.mxu0 0.0
        %366 = vmatpush1.msra.mxu0 0.0
        %367 = vmatprep.subr.mxu0 0.0
        %368 = vmatpush1.msra.mxu0 0.0
        %369 = vmatprep.mubr.f32.mxu0 0.0
        %370 = vmatmul.mubr.f32.gmra.mrb[0].mxu0 %v206
        %v371 = vpop.f32.mrb[0].mxu0
        %v372 = vadd.f32 0.0, %v371
        %v373 = vpop.f32.mrb[0].mxu0
        %374 = vmatprep.mubr.f32.mxu0 0.0
        %375 = vmatmul.mubr.f32.gmra.mrb[0].mxu0 %v209
        %v376 = vpop.f32.mrb[0].mxu0
        %v377 = vadd.f32 0.0, %v376
        %v378 = vpop.f32.mrb[0].mxu0
        %379 = vmatprep.mubr.f32.mxu0 0.0
        %380 = vmatmul.mubr.f32.gmra.mrb[0].mxu0 %v212
        %v381 = vpop.f32.mrb[0].mxu0
        %v382 = vadd.f32 0.0, %v381
        %v383 = vpop.f32.mrb[0].mxu0
        %384 = vmatprep.mubr.f32.mxu0 0.0
        %385 = vmatmul.mubr.f32.gmra.mrb[0].mxu0 %v215
        %v386 = vpop.f32.mrb[0].mxu0
        %v387 = vadd.f32 0.0, %v386
        %v388 = vpop.f32.mrb[0].mxu0
        %389 = vmatprep.mubr.f32.mxu0 0.0
        %390 = vmatmul.mubr.f32.gmra.mrb[0].mxu0 %v218
        %v391 = vpop.f32.mrb[0].mxu0
        %v392 = vadd.f32 0.0, %v391
        %v393 = vpop.f32.mrb[0].mxu0
        %394 = vmatprep.mubr.f32.mxu0 0.0
        %395 = vmatmul.mubr.f32.gmra.mrb[0].mxu0 %v221
        %v396 = vpop.f32.mrb[0].mxu0
        %v397 = vadd.f32 0.0, %v396
        %v398 = vpop.f32.mrb[0].mxu0
        %399 = vmatprep.mubr.f32.mxu0 0.0
        %400 = vmatmul.mubr.f32.gmra.mrb[0].mxu0 %v224
        %v401 = vpop.f32.mrb[0].mxu0
        %v402 = vadd.f32 0.0, %v401
        %v403 = vpop.f32.mrb[0].mxu0
        %404 = vmatprep.mubr.f32.mxu0 0.0
        %405 = vmatmul.mubr.f32.gmra.mrb[0].mxu0 %v227
        %v406 = vpop.f32.mrb[0].mxu0
        %v407 = vadd.f32 0.0, %v406
        %v408 = vpop.f32.mrb[0].mxu0
        %409 = vmatprep.mubr.f32.mxu0 0.0
        %410 = vmatmul.mubr.f32.gmra.mrb[0].mxu0 %v230
        %v411 = vpop.f32.mrb[0].mxu0
        %v412 = vadd.f32 0.0, %v411
        %v413 = vpop.f32.mrb[0].mxu0
        %414 = vmatprep.mubr.f32.mxu0 0.0
        %415 = vmatmul.mubr.f32.gmra.mrb[0].mxu0 %v233
        %v416 = vpop.f32.mrb[0].mxu0
        %v417 = vadd.f32 0.0, %v416
        %v418 = vpop.f32.mrb[0].mxu0
        %419 = vmatprep.mubr.f32.mxu0 0.0
        %420 = vmatmul.mubr.f32.gmra.mrb[0].mxu0 %v236
        %v421 = vpop.f32.mrb[0].mxu0
        %v422 = vadd.f32 0.0, %v421
        %v423 = vpop.f32.mrb[0].mxu0
        %424 = vmatprep.mubr.f32.mxu0 0.0
        %425 = vmatmul.mubr.f32.gmra.mrb[0].mxu0 %v239
        %v426 = vpop.f32.mrb[0].mxu0
        %v427 = vadd.f32 0.0, %v426
        %v428 = vpop.f32.mrb[0].mxu0
        %429 = vmatprep.mubr.f32.mxu0 0.0
        %430 = vmatmul.mubr.f32.gmra.mrb[0].mxu0 %v242
        %v431 = vpop.f32.mrb[0].mxu0
        %v432 = vadd.f32 0.0, %v431
        %v433 = vpop.f32.mrb[0].mxu0
        %434 = vmatprep.mubr.f32.mxu0 0.0
        %435 = vmatmul.mubr.f32.gmra.mrb[0].mxu0 %v245
        %v436 = vpop.f32.mrb[0].mxu0
        %v437 = vadd.f32 0.0, %v436
        %v438 = vpop.f32.mrb[0].mxu0
        %439 = vmatprep.mubr.f32.mxu0 0.0
        %440 = vmatmul.mubr.f32.gmra.mrb[0].mxu0 %v248
        %v441 = vpop.f32.mrb[0].mxu0
        %v442 = vadd.f32 0.0, %v441
        %v443 = vpop.f32.mrb[0].mxu0
        %444 = vmatprep.mubr.f32.mxu0 0.0
        %445 = vmatmul.mubr.f32.gmra.mrb[0].mxu0 %v251
        %v446 = vpop.f32.mrb[0].mxu0
        %v447 = vadd.f32 0.0, %v446
        %v448 = vpop.f32.mrb[0].mxu0
        %449 = vmatprep.mubr.f32.mxu0 0.0
        %450 = vmatmul.mubr.f32.gmra.mrb[0].mxu0 %v254
        %v451 = vpop.f32.mrb[0].mxu0
        %v452 = vadd.f32 0.0, %v451
        %v453 = vpop.f32.mrb[0].mxu0
        %454 = vmatprep.mubr.f32.mxu0 0.0
        %455 = vmatmul.mubr.f32.gmra.mrb[0].mxu0 %v257
        %v456 = vpop.f32.mrb[0].mxu0
        %v457 = vadd.f32 0.0, %v456
        %v458 = vpop.f32.mrb[0].mxu0
        %459 = vmatprep.mubr.f32.mxu0 0.0
        %460 = vmatmul.mubr.f32.gmra.mrb[0].mxu0 %v260
        %v461 = vpop.f32.mrb[0].mxu0
        %v462 = vadd.f32 0.0, %v461
        %v463 = vpop.f32.mrb[0].mxu0
        %464 = vmatprep.mubr.f32.mxu0 0.0
        %465 = vmatmul.mubr.f32.gmra.mrb[0].mxu0 %v263
        %v466 = vpop.f32.mrb[0].mxu0
        %v467 = vadd.f32 0.0, %v466
        %v468 = vpop.f32.mrb[0].mxu0
        %469 = vmatprep.mubr.f32.mxu0 0.0
        %470 = vmatmul.mubr.f32.gmra.mrb[0].mxu0 %v266
        %v471 = vpop.f32.mrb[0].mxu0
        %v472 = vadd.f32 0.0, %v471
        %v473 = vpop.f32.mrb[0].mxu0
        %474 = vmatprep.mubr.f32.mxu0 0.0
        %475 = vmatmul.mubr.f32.gmra.mrb[0].mxu0 %v269
        %v476 = vpop.f32.mrb[0].mxu0
        %v477 = vadd.f32 0.0, %v476
        %v478 = vpop.f32.mrb[0].mxu0
        %479 = vmatprep.mubr.f32.mxu0 0.0
        %480 = vmatmul.mubr.f32.gmra.mrb[0].mxu0 %v272
        %v481 = vpop.f32.mrb[0].mxu0
        %v482 = vadd.f32 0.0, %v481
        %v483 = vpop.f32.mrb[0].mxu0
        %484 = vmatprep.mubr.f32.mxu0 0.0
        %485 = vmatmul.mubr.f32.gmra.mrb[0].mxu0 %v275
        %v486 = vpop.f32.mrb[0].mxu0
        %v487 = vadd.f32 0.0, %v486
        %v488 = vpop.f32.mrb[0].mxu0
        %489 = vmatprep.mubr.f32.mxu0 0.0
        %490 = vmatmul.mubr.f32.gmra.mrb[0].mxu0 %v278
        %v491 = vpop.f32.mrb[0].mxu0
        %v492 = vadd.f32 0.0, %v491
        %v493 = vpop.f32.mrb[0].mxu0
        %494 = vmatprep.mubr.f32.mxu0 0.0
        %495 = vmatmul.mubr.f32.gmra.mrb[0].mxu0 %v281
        %v496 = vpop.f32.mrb[0].mxu0
        %v497 = vadd.f32 0.0, %v496
        %v498 = vpop.f32.mrb[0].mxu0
        %499 = vmatprep.mubr.f32.mxu0 0.0
        %500 = vmatmul.mubr.f32.gmra.mrb[0].mxu0 %v284
        %v501 = vpop.f32.mrb[0].mxu0
        %v502 = vadd.f32 0.0, %v501
        %v503 = vpop.f32.mrb[0].mxu0
        %504 = vmatprep.mubr.f32.mxu0 0.0
        %505 = vmatmul.mubr.f32.gmra.mrb[0].mxu0 %v287
        %v506 = vpop.f32.mrb[0].mxu0
        %v507 = vadd.f32 0.0, %v506
        %v508 = vpop.f32.mrb[0].mxu0
        %509 = vmatprep.mubr.f32.mxu0 0.0
        %510 = vmatmul.mubr.f32.gmra.mrb[0].mxu0 %v290
        %v511 = vpop.f32.mrb[0].mxu0
        %v512 = vadd.f32 0.0, %v511
        %v513 = vpop.f32.mrb[0].mxu0
        %514 = vmatprep.mubr.f32.mxu0 0.0
        %515 = vmatmul.mubr.f32.gmra.mrb[0].mxu0 %v293
        %v516 = vpop.f32.mrb[0].mxu0
        %v517 = vadd.f32 0.0, %v516
        %v518 = vpop.f32.mrb[0].mxu0
        %519 = vmatprep.mubr.f32.mxu0 0.0
        %520 = vmatmul.mubr.f32.gmra.mrb[0].mxu0 %v296
        %v521 = vpop.f32.mrb[0].mxu0
        %v522 = vadd.f32 0.0, %v521
        %v523 = vpop.f32.mrb[0].mxu0
        %524 = vmatprep.mubr.f32.mxu0 0.0
        %525 = vmatmul.mubr.f32.gmra.mrb[0].mxu0 %v299
        %v526 = vpop.f32.mrb[0].mxu0
        %v527 = vadd.f32 0.0, %v526
        %v528 = vpop.f32.mrb[0].mxu0
        %529 = vdwg.mxu0
        %530 = vst [vmem:[#allocation2] sm:$0xff] %v372
        %531 = vst [vmem:[#allocation2 + $0x8] sm:$0xff] %v377
        %532 = vst [vmem:[#allocation2 + $0x10] sm:$0xff] %v382
        %533 = vst [vmem:[#allocation2 + $0x18] sm:$0xff] %v387
        %534 = vst [vmem:[#allocation2 + $0x20] sm:$0xff] %v392
        %535 = vst [vmem:[#allocation2 + $0x28] sm:$0xff] %v397
        %536 = vst [vmem:[#allocation2 + $0x30] sm:$0xff] %v402
        %537 = vst [vmem:[#allocation2 + $0x38] sm:$0xff] %v407
        %538 = vst [vmem:[#allocation2 + $0x40] sm:$0xff] %v412
        %539 = vst [vmem:[#allocation2 + $0x48] sm:$0xff] %v417
        %540 = vst [vmem:[#allocation2 + $0x50] sm:$0xff] %v422
        %541 = vst [vmem:[#allocation2 + $0x58] sm:$0xff] %v427
        %542 = vst [vmem:[#allocation2 + $0x60] sm:$0xff] %v432
        %543 = vst [vmem:[#allocation2 + $0x68] sm:$0xff] %v437
        %544 = vst [vmem:[#allocation2 + $0x70] sm:$0xff] %v442
        %545 = vst [vmem:[#allocation2 + $0x78] sm:$0xff] %v447
        %546 = vst [vmem:[#allocation2 + $0x80] sm:$0xff] %v452
        %547 = vst [vmem:[#allocation2 + $0x88] sm:$0xff] %v457
        %548 = vst [vmem:[#allocation2 + $0x90] sm:$0xff] %v462
        %549 = vst [vmem:[#allocation2 + $0x98] sm:$0xff] %v467
        %550 = vst [vmem:[#allocation2 + $0xa0] sm:$0xff] %v472
        %551 = vst [vmem:[#allocation2 + $0xa8] sm:$0xff] %v477
        %552 = vst [vmem:[#allocation2 + $0xb0] sm:$0xff] %v482
        %553 = vst [vmem:[#allocation2 + $0xb8] sm:$0xff] %v487
        %554 = vst [vmem:[#allocation2 + $0xc0] sm:$0xff] %v492
        %555 = vst [vmem:[#allocation2 + $0xc8] sm:$0xff] %v497
        %556 = vst [vmem:[#allocation2 + $0xd0] sm:$0xff] %v502
        %557 = vst [vmem:[#allocation2 + $0xd8] sm:$0xff] %v507
        %558 = vst [vmem:[#allocation2 + $0xe0] sm:$0xff] %v512
        %559 = vst [vmem:[#allocation2 + $0xe8] sm:$0xff] %v517
        %560 = vst [vmem:[#allocation2 + $0xf0] sm:$0xff] %v522
        %561 = vst [vmem:[#allocation2 + $0xf8] sm:$0xff] %v527
        %s562 = scalar_lea.vmem %s168, 16
        %v563 = vld [vmem:[%s562] sm:$0xff]
        %v564 = vld [vmem:[%s562 + $0x8] sm:$0xff]
        %v565 = vld [vmem:[%s562 + $0x10] sm:$0xff]
        %v566 = vld [vmem:[%s562 + $0x18] sm:$0xff]
        %v567 = vld [vmem:[%s562 + $0x20] sm:$0xff]
        %v568 = vld [vmem:[%s562 + $0x28] sm:$0xff]
        %v569 = vld [vmem:[%s562 + $0x30] sm:$0xff]
        %v570 = vld [vmem:[%s562 + $0x38] sm:$0xff]
        %v571 = vld [vmem:[%s562 + $0x40] sm:$0xff]
        %v572 = vld [vmem:[%s562 + $0x48] sm:$0xff]
        %v573 = vld [vmem:[%s562 + $0x50] sm:$0xff]
        %v574 = vld [vmem:[%s562 + $0x58] sm:$0xff]
        %v575 = vld [vmem:[%s562 + $0x60] sm:$0xff]
        %v576 = vld [vmem:[%s562 + $0x68] sm:$0xff]
        %v577 = vld [vmem:[%s562 + $0x70] sm:$0xff]
        %v578 = vld [vmem:[%s562 + $0x78] sm:$0xff]
        %v579 = vld [vmem:[%s562 + $0x80] sm:$0xff]
        %v580 = vld [vmem:[%s562 + $0x88] sm:$0xff]
        %v581 = vld [vmem:[%s562 + $0x90] sm:$0xff]
        %v582 = vld [vmem:[%s562 + $0x98] sm:$0xff]
        %v583 = vld [vmem:[%s562 + $0xa0] sm:$0xff]
        %v584 = vld [vmem:[%s562 + $0xa8] sm:$0xff]
        %v585 = vld [vmem:[%s562 + $0xb0] sm:$0xff]
        %v586 = vld [vmem:[%s562 + $0xb8] sm:$0xff]
        %v587 = vld [vmem:[%s562 + $0xc0] sm:$0xff]
        %v588 = vld [vmem:[%s562 + $0xc8] sm:$0xff]
        %v589 = vld [vmem:[%s562 + $0xd0] sm:$0xff]
        %v590 = vld [vmem:[%s562 + $0xd8] sm:$0xff]
        %v591 = vld [vmem:[%s562 + $0xe0] sm:$0xff]
        %v592 = vld [vmem:[%s562 + $0xe8] sm:$0xff]
        %v593 = vld [vmem:[%s562 + $0xf0] sm:$0xff]
        %v594 = vld [vmem:[%s562 + $0xf8] sm:$0xff]
        %s595 = scalar_lea.vmem %s1, 16
        %v596 = vld [vmem:[%s595] sm:$0xff]
        %v597 = vld [vmem:[%s595 + $0x8] sm:$0xf]
        %v599 = vsel %vm204, %v563, 0
        %v602 = vsel %vm204, %v564, 0
        %v605 = vsel %vm204, %v565, 0
        %v608 = vsel %vm204, %v566, 0
        %v611 = vsel %vm204, %v567, 0
        %v614 = vsel %vm204, %v568, 0
        %v617 = vsel %vm204, %v569, 0
        %v620 = vsel %vm204, %v570, 0
        %v623 = vsel %vm204, %v571, 0
        %v626 = vsel %vm204, %v572, 0
        %v629 = vsel %vm204, %v573, 0
        %v632 = vsel %vm204, %v574, 0
        %v635 = vsel %vm204, %v575, 0
        %v638 = vsel %vm204, %v576, 0
        %v641 = vsel %vm204, %v577, 0
        %v644 = vsel %vm204, %v578, 0
        %v647 = vsel %vm204, %v579, 0
        %v650 = vsel %vm204, %v580, 0
        %v653 = vsel %vm204, %v581, 0
        %v656 = vsel %vm204, %v582, 0
        %v659 = vsel %vm204, %v583, 0
        %v662 = vsel %vm204, %v584, 0
        %v665 = vsel %vm204, %v585, 0
        %v668 = vsel %vm204, %v586, 0
        %v671 = vsel %vm204, %v587, 0
        %v674 = vsel %vm204, %v588, 0
        %v677 = vsel %vm204, %v589, 0
        %v680 = vsel %vm204, %v590, 0
        %v683 = vsel %vm204, %v591, 0
        %v686 = vsel %vm204, %v592, 0
        %v689 = vsel %vm204, %v593, 0
        %v692 = vsel %vm204, %v594, 0
        %v695 = vsel %vm301, %v597, 0
        %697 = vmatprep.subr.mxu0 0.0
        %698 = vmatpush1.msra.mxu0 %v596
        %699 = vmatprep.subr.mxu0 0.0
        %700 = vmatpush1.msra.mxu0 %v695
        %701 = vmatprep.subr.mxu0 0.0
        %702 = vmatpush1.msra.mxu0 0.0
        %703 = vmatprep.subr.mxu0 0.0
        %704 = vmatpush1.msra.mxu0 0.0
        %705 = vmatprep.subr.mxu0 0.0
        %706 = vmatpush1.msra.mxu0 0.0
        %707 = vmatprep.subr.mxu0 0.0
        %708 = vmatpush1.msra.mxu0 0.0
        %709 = vmatprep.subr.mxu0 0.0
        %710 = vmatpush1.msra.mxu0 0.0
        %711 = vmatprep.subr.mxu0 0.0
        %712 = vmatpush1.msra.mxu0 0.0
        %713 = vmatprep.subr.mxu0 0.0
        %714 = vmatpush1.msra.mxu0 0.0
        %715 = vmatprep.subr.mxu0 0.0
        %716 = vmatpush1.msra.mxu0 0.0
        %717 = vmatprep.subr.mxu0 0.0
        %718 = vmatpush1.msra.mxu0 0.0
        %719 = vmatprep.subr.mxu0 0.0
        %720 = vmatpush1.msra.mxu0 0.0
        %721 = vmatprep.subr.mxu0 0.0
        %722 = vmatpush1.msra.mxu0 0.0
        %723 = vmatprep.subr.mxu0 0.0
        %724 = vmatpush1.msra.mxu0 0.0
        %725 = vmatprep.subr.mxu0 0.0
        %726 = vmatpush1.msra.mxu0 0.0
        %727 = vmatprep.subr.mxu0 0.0
        %728 = vmatpush1.msra.mxu0 0.0
        %729 = vmatprep.subr.mxu0 0.0
        %730 = vmatpush1.msra.mxu0 0.0
        %731 = vmatprep.subr.mxu0 0.0
        %732 = vmatpush1.msra.mxu0 0.0
        %733 = vmatprep.subr.mxu0 0.0
        %734 = vmatpush1.msra.mxu0 0.0
        %735 = vmatprep.subr.mxu0 0.0
        %736 = vmatpush1.msra.mxu0 0.0
        %737 = vmatprep.subr.mxu0 0.0
        %738 = vmatpush1.msra.mxu0 0.0
        %739 = vmatprep.subr.mxu0 0.0
        %740 = vmatpush1.msra.mxu0 0.0
        %741 = vmatprep.subr.mxu0 0.0
        %742 = vmatpush1.msra.mxu0 0.0
        %743 = vmatprep.subr.mxu0 0.0
        %744 = vmatpush1.msra.mxu0 0.0
        %745 = vmatprep.subr.mxu0 0.0
        %746 = vmatpush1.msra.mxu0 0.0
        %747 = vmatprep.subr.mxu0 0.0
        %748 = vmatpush1.msra.mxu0 0.0
        %749 = vmatprep.subr.mxu0 0.0
        %750 = vmatpush1.msra.mxu0 0.0
        %751 = vmatprep.subr.mxu0 0.0
        %752 = vmatpush1.msra.mxu0 0.0
        %753 = vmatprep.subr.mxu0 0.0
        %754 = vmatpush1.msra.mxu0 0.0
        %755 = vmatprep.subr.mxu0 0.0
        %756 = vmatpush1.msra.mxu0 0.0
        %757 = vmatprep.subr.mxu0 0.0
        %758 = vmatpush1.msra.mxu0 0.0
        %759 = vmatprep.subr.mxu0 0.0
        %760 = vmatpush1.msra.mxu0 0.0
        %761 = vmatprep.mubr.f32.mxu0 0.0
        %762 = vmatmul.mubr.f32.gmra.mrb[0].mxu0 %v599
        %v763 = vpop.f32.mrb[0].mxu0
        %v764 = vadd.f32 0.0, %v763
        %v765 = vpop.f32.mrb[0].mxu0
        %766 = vmatprep.mubr.f32.mxu0 0.0
        %767 = vmatmul.mubr.f32.gmra.mrb[0].mxu0 %v602
        %v768 = vpop.f32.mrb[0].mxu0
        %v769 = vadd.f32 0.0, %v768
        %v770 = vpop.f32.mrb[0].mxu0
        %771 = vmatprep.mubr.f32.mxu0 0.0
        %772 = vmatmul.mubr.f32.gmra.mrb[0].mxu0 %v605
        %v773 = vpop.f32.mrb[0].mxu0
        %v774 = vadd.f32 0.0, %v773
        %v775 = vpop.f32.mrb[0].mxu0
        %776 = vmatprep.mubr.f32.mxu0 0.0
        %777 = vmatmul.mubr.f32.gmra.mrb[0].mxu0 %v608
        %v778 = vpop.f32.mrb[0].mxu0
        %v779 = vadd.f32 0.0, %v778
        %v780 = vpop.f32.mrb[0].mxu0
        %781 = vmatprep.mubr.f32.mxu0 0.0
        %782 = vmatmul.mubr.f32.gmra.mrb[0].mxu0 %v611
        %v783 = vpop.f32.mrb[0].mxu0
        %v784 = vadd.f32 0.0, %v783
        %v785 = vpop.f32.mrb[0].mxu0
        %786 = vmatprep.mubr.f32.mxu0 0.0
        %787 = vmatmul.mubr.f32.gmra.mrb[0].mxu0 %v614
        %v788 = vpop.f32.mrb[0].mxu0
        %v789 = vadd.f32 0.0, %v788
        %v790 = vpop.f32.mrb[0].mxu0
        %791 = vmatprep.mubr.f32.mxu0 0.0
        %792 = vmatmul.mubr.f32.gmra.mrb[0].mxu0 %v617
        %v793 = vpop.f32.mrb[0].mxu0
        %v794 = vadd.f32 0.0, %v793
        %v795 = vpop.f32.mrb[0].mxu0
        %796 = vmatprep.mubr.f32.mxu0 0.0
        %797 = vmatmul.mubr.f32.gmra.mrb[0].mxu0 %v620
        %v798 = vpop.f32.mrb[0].mxu0
        %v799 = vadd.f32 0.0, %v798
        %v800 = vpop.f32.mrb[0].mxu0
        %801 = vmatprep.mubr.f32.mxu0 0.0
        %802 = vmatmul.mubr.f32.gmra.mrb[0].mxu0 %v623
        %v803 = vpop.f32.mrb[0].mxu0
        %v804 = vadd.f32 0.0, %v803
        %v805 = vpop.f32.mrb[0].mxu0
        %806 = vmatprep.mubr.f32.mxu0 0.0
        %807 = vmatmul.mubr.f32.gmra.mrb[0].mxu0 %v626
        %v808 = vpop.f32.mrb[0].mxu0
        %v809 = vadd.f32 0.0, %v808
        %v810 = vpop.f32.mrb[0].mxu0
        %811 = vmatprep.mubr.f32.mxu0 0.0
        %812 = vmatmul.mubr.f32.gmra.mrb[0].mxu0 %v629
        %v813 = vpop.f32.mrb[0].mxu0
        %v814 = vadd.f32 0.0, %v813
        %v815 = vpop.f32.mrb[0].mxu0
        %816 = vmatprep.mubr.f32.mxu0 0.0
        %817 = vmatmul.mubr.f32.gmra.mrb[0].mxu0 %v632
        %v818 = vpop.f32.mrb[0].mxu0
        %v819 = vadd.f32 0.0, %v818
        %v820 = vpop.f32.mrb[0].mxu0
        %821 = vmatprep.mubr.f32.mxu0 0.0
        %822 = vmatmul.mubr.f32.gmra.mrb[0].mxu0 %v635
        %v823 = vpop.f32.mrb[0].mxu0
        %v824 = vadd.f32 0.0, %v823
        %v825 = vpop.f32.mrb[0].mxu0
        %826 = vmatprep.mubr.f32.mxu0 0.0
        %827 = vmatmul.mubr.f32.gmra.mrb[0].mxu0 %v638
        %v828 = vpop.f32.mrb[0].mxu0
        %v829 = vadd.f32 0.0, %v828
        %v830 = vpop.f32.mrb[0].mxu0
        %831 = vmatprep.mubr.f32.mxu0 0.0
        %832 = vmatmul.mubr.f32.gmra.mrb[0].mxu0 %v641
        %v833 = vpop.f32.mrb[0].mxu0
        %v834 = vadd.f32 0.0, %v833
        %v835 = vpop.f32.mrb[0].mxu0
        %836 = vmatprep.mubr.f32.mxu0 0.0
        %837 = vmatmul.mubr.f32.gmra.mrb[0].mxu0 %v644
        %v838 = vpop.f32.mrb[0].mxu0
        %v839 = vadd.f32 0.0, %v838
        %v840 = vpop.f32.mrb[0].mxu0
        %841 = vmatprep.mubr.f32.mxu0 0.0
        %842 = vmatmul.mubr.f32.gmra.mrb[0].mxu0 %v647
        %v843 = vpop.f32.mrb[0].mxu0
        %v844 = vadd.f32 0.0, %v843
        %v845 = vpop.f32.mrb[0].mxu0
        %846 = vmatprep.mubr.f32.mxu0 0.0
        %847 = vmatmul.mubr.f32.gmra.mrb[0].mxu0 %v650
        %v848 = vpop.f32.mrb[0].mxu0
        %v849 = vadd.f32 0.0, %v848
        %v850 = vpop.f32.mrb[0].mxu0
        %851 = vmatprep.mubr.f32.mxu0 0.0
        %852 = vmatmul.mubr.f32.gmra.mrb[0].mxu0 %v653
        %v853 = vpop.f32.mrb[0].mxu0
        %v854 = vadd.f32 0.0, %v853
        %v855 = vpop.f32.mrb[0].mxu0
        %856 = vmatprep.mubr.f32.mxu0 0.0
        %857 = vmatmul.mubr.f32.gmra.mrb[0].mxu0 %v656
        %v858 = vpop.f32.mrb[0].mxu0
        %v859 = vadd.f32 0.0, %v858
        %v860 = vpop.f32.mrb[0].mxu0
        %861 = vmatprep.mubr.f32.mxu0 0.0
        %862 = vmatmul.mubr.f32.gmra.mrb[0].mxu0 %v659
        %v863 = vpop.f32.mrb[0].mxu0
        %v864 = vadd.f32 0.0, %v863
        %v865 = vpop.f32.mrb[0].mxu0
        %866 = vmatprep.mubr.f32.mxu0 0.0
        %867 = vmatmul.mubr.f32.gmra.mrb[0].mxu0 %v662
        %v868 = vpop.f32.mrb[0].mxu0
        %v869 = vadd.f32 0.0, %v868
        %v870 = vpop.f32.mrb[0].mxu0
        %871 = vmatprep.mubr.f32.mxu0 0.0
        %872 = vmatmul.mubr.f32.gmra.mrb[0].mxu0 %v665
        %v873 = vpop.f32.mrb[0].mxu0
        %v874 = vadd.f32 0.0, %v873
        %v875 = vpop.f32.mrb[0].mxu0
        %876 = vmatprep.mubr.f32.mxu0 0.0
        %877 = vmatmul.mubr.f32.gmra.mrb[0].mxu0 %v668
        %v878 = vpop.f32.mrb[0].mxu0
        %v879 = vadd.f32 0.0, %v878
        %v880 = vpop.f32.mrb[0].mxu0
        %881 = vmatprep.mubr.f32.mxu0 0.0
        %882 = vmatmul.mubr.f32.gmra.mrb[0].mxu0 %v671
        %v883 = vpop.f32.mrb[0].mxu0
        %v884 = vadd.f32 0.0, %v883
        %v885 = vpop.f32.mrb[0].mxu0
        %886 = vmatprep.mubr.f32.mxu0 0.0
        %887 = vmatmul.mubr.f32.gmra.mrb[0].mxu0 %v674
        %v888 = vpop.f32.mrb[0].mxu0
        %v889 = vadd.f32 0.0, %v888
        %v890 = vpop.f32.mrb[0].mxu0
        %891 = vmatprep.mubr.f32.mxu0 0.0
        %892 = vmatmul.mubr.f32.gmra.mrb[0].mxu0 %v677
        %v893 = vpop.f32.mrb[0].mxu0
        %v894 = vadd.f32 0.0, %v893
        %v895 = vpop.f32.mrb[0].mxu0
        %896 = vmatprep.mubr.f32.mxu0 0.0
        %897 = vmatmul.mubr.f32.gmra.mrb[0].mxu0 %v680
        %v898 = vpop.f32.mrb[0].mxu0
        %v899 = vadd.f32 0.0, %v898
        %v900 = vpop.f32.mrb[0].mxu0
        %901 = vmatprep.mubr.f32.mxu0 0.0
        %902 = vmatmul.mubr.f32.gmra.mrb[0].mxu0 %v683
        %v903 = vpop.f32.mrb[0].mxu0
        %v904 = vadd.f32 0.0, %v903
        %v905 = vpop.f32.mrb[0].mxu0
        %906 = vmatprep.mubr.f32.mxu0 0.0
        %907 = vmatmul.mubr.f32.gmra.mrb[0].mxu0 %v686
        %v908 = vpop.f32.mrb[0].mxu0
        %v909 = vadd.f32 0.0, %v908
        %v910 = vpop.f32.mrb[0].mxu0
        %911 = vmatprep.mubr.f32.mxu0 0.0
        %912 = vmatmul.mubr.f32.gmra.mrb[0].mxu0 %v689
        %v913 = vpop.f32.mrb[0].mxu0
        %v914 = vadd.f32 0.0, %v913
        %v915 = vpop.f32.mrb[0].mxu0
        %916 = vmatprep.mubr.f32.mxu0 0.0
        %917 = vmatmul.mubr.f32.gmra.mrb[0].mxu0 %v692
        %v918 = vpop.f32.mrb[0].mxu0
        %v919 = vadd.f32 0.0, %v918
        %v920 = vpop.f32.mrb[0].mxu0
        %921 = vdwg.mxu0
        %v922 = vld [vmem:[#allocation2] sm:$0xff]
        %v923 = vld [vmem:[#allocation2 + $0x8] sm:$0xff]
        %v924 = vld [vmem:[#allocation2 + $0x10] sm:$0xff]
        %v925 = vld [vmem:[#allocation2 + $0x18] sm:$0xff]
        %v926 = vld [vmem:[#allocation2 + $0x20] sm:$0xff]
        %v927 = vld [vmem:[#allocation2 + $0x28] sm:$0xff]
        %v928 = vld [vmem:[#allocation2 + $0x30] sm:$0xff]
        %v929 = vld [vmem:[#allocation2 + $0x38] sm:$0xff]
        %v930 = vld [vmem:[#allocation2 + $0x40] sm:$0xff]
        %v931 = vld [vmem:[#allocation2 + $0x48] sm:$0xff]
        %v932 = vld [vmem:[#allocation2 + $0x50] sm:$0xff]
        %v933 = vld [vmem:[#allocation2 + $0x58] sm:$0xff]
        %v934 = vld [vmem:[#allocation2 + $0x60] sm:$0xff]
        %v935 = vld [vmem:[#allocation2 + $0x68] sm:$0xff]
        %v936 = vld [vmem:[#allocation2 + $0x70] sm:$0xff]
        %v937 = vld [vmem:[#allocation2 + $0x78] sm:$0xff]
        %v938 = vld [vmem:[#allocation2 + $0x80] sm:$0xff]
        %v939 = vld [vmem:[#allocation2 + $0x88] sm:$0xff]
        %v940 = vld [vmem:[#allocation2 + $0x90] sm:$0xff]
        %v941 = vld [vmem:[#allocation2 + $0x98] sm:$0xff]
        %v942 = vld [vmem:[#allocation2 + $0xa0] sm:$0xff]
        %v943 = vld [vmem:[#allocation2 + $0xa8] sm:$0xff]
        %v944 = vld [vmem:[#allocation2 + $0xb0] sm:$0xff]
        %v945 = vld [vmem:[#allocation2 + $0xb8] sm:$0xff]
        %v946 = vld [vmem:[#allocation2 + $0xc0] sm:$0xff]
        %v947 = vld [vmem:[#allocation2 + $0xc8] sm:$0xff]
        %v948 = vld [vmem:[#allocation2 + $0xd0] sm:$0xff]
        %v949 = vld [vmem:[#allocation2 + $0xd8] sm:$0xff]
        %v950 = vld [vmem:[#allocation2 + $0xe0] sm:$0xff]
        %v951 = vld [vmem:[#allocation2 + $0xe8] sm:$0xff]
        %v952 = vld [vmem:[#allocation2 + $0xf0] sm:$0xff]
        %v953 = vld [vmem:[#allocation2 + $0xf8] sm:$0xff]
        %v954 = vadd.f32 %v922, %v764
        %v955 = vadd.f32 %v923, %v769
        %v956 = vadd.f32 %v924, %v774
        %v957 = vadd.f32 %v925, %v779
        %v958 = vadd.f32 %v926, %v784
        %v959 = vadd.f32 %v927, %v789
        %v960 = vadd.f32 %v928, %v794
        %v961 = vadd.f32 %v929, %v799
        %v962 = vadd.f32 %v930, %v804
        %v963 = vadd.f32 %v931, %v809
        %v964 = vadd.f32 %v932, %v814
        %v965 = vadd.f32 %v933, %v819
        %v966 = vadd.f32 %v934, %v824
        %v967 = vadd.f32 %v935, %v829
        %v968 = vadd.f32 %v936, %v834
        %v969 = vadd.f32 %v937, %v839
        %v970 = vadd.f32 %v938, %v844
        %v971 = vadd.f32 %v939, %v849
        %v972 = vadd.f32 %v940, %v854
        %v973 = vadd.f32 %v941, %v859
        %v974 = vadd.f32 %v942, %v864
        %v975 = vadd.f32 %v943, %v869
        %v976 = vadd.f32 %v944, %v874
        %v977 = vadd.f32 %v945, %v879
        %v978 = vadd.f32 %v946, %v884
        %v979 = vadd.f32 %v947, %v889
        %v980 = vadd.f32 %v948, %v894
        %v981 = vadd.f32 %v949, %v899
        %v982 = vadd.f32 %v950, %v904
        %v983 = vadd.f32 %v951, %v909
        %v984 = vadd.f32 %v952, %v914
        %v985 = vadd.f32 %v953, %v919
        %986 = vst [vmem:[#allocation2] sm:$0xff] %v954
        %987 = vst [vmem:[#allocation2 + $0x8] sm:$0xff] %v955
        %988 = vst [vmem:[#allocation2 + $0x10] sm:$0xff] %v956
        %989 = vst [vmem:[#allocation2 + $0x18] sm:$0xff] %v957
        %990 = vst [vmem:[#allocation2 + $0x20] sm:$0xff] %v958
        %991 = vst [vmem:[#allocation2 + $0x28] sm:$0xff] %v959
        %992 = vst [vmem:[#allocation2 + $0x30] sm:$0xff] %v960
        %993 = vst [vmem:[#allocation2 + $0x38] sm:$0xff] %v961
        %994 = vst [vmem:[#allocation2 + $0x40] sm:$0xff] %v962
        %995 = vst [vmem:[#allocation2 + $0x48] sm:$0xff] %v963
        %996 = vst [vmem:[#allocation2 + $0x50] sm:$0xff] %v964
        %997 = vst [vmem:[#allocation2 + $0x58] sm:$0xff] %v965
        %998 = vst [vmem:[#allocation2 + $0x60] sm:$0xff] %v966
        %999 = vst [vmem:[#allocation2 + $0x68] sm:$0xff] %v967
        %1000 = vst [vmem:[#allocation2 + $0x70] sm:$0xff] %v968
        %1001 = vst [vmem:[#allocation2 + $0x78] sm:$0xff] %v969
        %1002 = vst [vmem:[#allocation2 + $0x80] sm:$0xff] %v970
        %1003 = vst [vmem:[#allocation2 + $0x88] sm:$0xff] %v971
        %1004 = vst [vmem:[#allocation2 + $0x90] sm:$0xff] %v972
        %1005 = vst [vmem:[#allocation2 + $0x98] sm:$0xff] %v973
        %1006 = vst [vmem:[#allocation2 + $0xa0] sm:$0xff] %v974
        %1007 = vst [vmem:[#allocation2 + $0xa8] sm:$0xff] %v975
        %1008 = vst [vmem:[#allocation2 + $0xb0] sm:$0xff] %v976
        %1009 = vst [vmem:[#allocation2 + $0xb8] sm:$0xff] %v977
        %1010 = vst [vmem:[#allocation2 + $0xc0] sm:$0xff] %v978
        %1011 = vst [vmem:[#allocation2 + $0xc8] sm:$0xff] %v979
        %1012 = vst [vmem:[#allocation2 + $0xd0] sm:$0xff] %v980
        %1013 = vst [vmem:[#allocation2 + $0xd8] sm:$0xff] %v981
        %1014 = vst [vmem:[#allocation2 + $0xe0] sm:$0xff] %v982
        %1015 = vst [vmem:[#allocation2 + $0xe8] sm:$0xff] %v983
        %1016 = vst [vmem:[#allocation2 + $0xf0] sm:$0xff] %v984
        %1017 = vst [vmem:[#allocation2 + $0xf8] sm:$0xff] %v985
        %s1018 = scalar_lea.vmem %s168, 32
        %v1019 = vld [vmem:[%s1018] sm:$0xff]
        %v1020 = vld [vmem:[%s1018 + $0x8] sm:$0xff]
        %v1021 = vld [vmem:[%s1018 + $0x10] sm:$0xff]
        %v1022 = vld [vmem:[%s1018 + $0x18] sm:$0xff]
        %v1023 = vld [vmem:[%s1018 + $0x20] sm:$0xff]
        %v1024 = vld [vmem:[%s1018 + $0x28] sm:$0xff]
        %v1025 = vld [vmem:[%s1018 + $0x30] sm:$0xff]
        %v1026 = vld [vmem:[%s1018 + $0x38] sm:$0xff]
        %v1027 = vld [vmem:[%s1018 + $0x40] sm:$0xff]
        %v1028 = vld [vmem:[%s1018 + $0x48] sm:$0xff]
        %v1029 = vld [vmem:[%s1018 + $0x50] sm:$0xff]
        %v1030 = vld [vmem:[%s1018 + $0x58] sm:$0xff]
        %v1031 = vld [vmem:[%s1018 + $0x60] sm:$0xff]
        %v1032 = vld [vmem:[%s1018 + $0x68] sm:$0xff]
        %v1033 = vld [vmem:[%s1018 + $0x70] sm:$0xff]
        %v1034 = vld [vmem:[%s1018 + $0x78] sm:$0xff]
        %v1035 = vld [vmem:[%s1018 + $0x80] sm:$0xff]
        %v1036 = vld [vmem:[%s1018 + $0x88] sm:$0xff]
        %v1037 = vld [vmem:[%s1018 + $0x90] sm:$0xff]
        %v1038 = vld [vmem:[%s1018 + $0x98] sm:$0xff]
        %v1039 = vld [vmem:[%s1018 + $0xa0] sm:$0xff]
        %v1040 = vld [vmem:[%s1018 + $0xa8] sm:$0xff]
        %v1041 = vld [vmem:[%s1018 + $0xb0] sm:$0xff]
        %v1042 = vld [vmem:[%s1018 + $0xb8] sm:$0xff]
        %v1043 = vld [vmem:[%s1018 + $0xc0] sm:$0xff]
        %v1044 = vld [vmem:[%s1018 + $0xc8] sm:$0xff]
        %v1045 = vld [vmem:[%s1018 + $0xd0] sm:$0xff]
        %v1046 = vld [vmem:[%s1018 + $0xd8] sm:$0xff]
        %v1047 = vld [vmem:[%s1018 + $0xe0] sm:$0xff]
        %v1048 = vld [vmem:[%s1018 + $0xe8] sm:$0xff]
        %v1049 = vld [vmem:[%s1018 + $0xf0] sm:$0xff]
        %v1050 = vld [vmem:[%s1018 + $0xf8] sm:$0xff]
        %s1051 = scalar_lea.vmem %s1, 32
        %v1052 = vld [vmem:[%s1051] sm:$0xff]
        %v1053 = vld [vmem:[%s1051 + $0x8] sm:$0xf]
        %v1055 = vsel %vm204, %v1019, 0
        %v1058 = vsel %vm204, %v1020, 0
        %v1061 = vsel %vm204, %v1021, 0
        %v1064 = vsel %vm204, %v1022, 0
        %v1067 = vsel %vm204, %v1023, 0
        %v1070 = vsel %vm204, %v1024, 0
        %v1073 = vsel %vm204, %v1025, 0
        %v1076 = vsel %vm204, %v1026, 0
        %v1079 = vsel %vm204, %v1027, 0
        %v1082 = vsel %vm204, %v1028, 0
        %v1085 = vsel %vm204, %v1029, 0
        %v1088 = vsel %vm204, %v1030, 0
        %v1091 = vsel %vm204, %v1031, 0
        %v1094 = vsel %vm204, %v1032, 0
        %v1097 = vsel %vm204, %v1033, 0
        %v1100 = vsel %vm204, %v1034, 0
        %v1103 = vsel %vm204, %v1035, 0
        %v1106 = vsel %vm204, %v1036, 0
        %v1109 = vsel %vm204, %v1037, 0
        %v1112 = vsel %vm204, %v1038, 0
        %v1115 = vsel %vm204, %v1039, 0
        %v1118 = vsel %vm204, %v1040, 0
        %v1121 = vsel %vm204, %v1041, 0
        %v1124 = vsel %vm204, %v1042, 0
        %v1127 = vsel %vm204, %v1043, 0
        %v1130 = vsel %vm204, %v1044, 0
        %v1133 = vsel %vm204, %v1045, 0
        %v1136 = vsel %vm204, %v1046, 0
        %v1139 = vsel %vm204, %v1047, 0
        %v1142 = vsel %vm204, %v1048, 0
        %v1145 = vsel %vm204, %v1049, 0
        %v1148 = vsel %vm204, %v1050, 0
        %v1151 = vsel %vm301, %v1053, 0
        %1153 = vmatprep.subr.mxu0 0.0
        %1154 = vmatpush1.msra.mxu0 %v1052
        %1155 = vmatprep.subr.mxu0 0.0
        %1156 = vmatpush1.msra.mxu0 %v1151
        %1157 = vmatprep.subr.mxu0 0.0
        %1158 = vmatpush1.msra.mxu0 0.0
        %1159 = vmatprep.subr.mxu0 0.0
        %1160 = vmatpush1.msra.mxu0 0.0
        %1161 = vmatprep.subr.mxu0 0.0
        %1162 = vmatpush1.msra.mxu0 0.0
        %1163 = vmatprep.subr.mxu0 0.0
        %1164 = vmatpush1.msra.mxu0 0.0
        %1165 = vmatprep.subr.mxu0 0.0
        %1166 = vmatpush1.msra.mxu0 0.0
        %1167 = vmatprep.subr.mxu0 0.0
        %1168 = vmatpush1.msra.mxu0 0.0
        %1169 = vmatprep.subr.mxu0 0.0
        %1170 = vmatpush1.msra.mxu0 0.0
        %1171 = vmatprep.subr.mxu0 0.0
        %1172 = vmatpush1.msra.mxu0 0.0
        %1173 = vmatprep.subr.mxu0 0.0
        %1174 = vmatpush1.msra.mxu0 0.0
        %1175 = vmatprep.subr.mxu0 0.0
        %1176 = vmatpush1.msra.mxu0 0.0
        %1177 = vmatprep.subr.mxu0 0.0
        %1178 = vmatpush1.msra.mxu0 0.0
        %1179 = vmatprep.subr.mxu0 0.0
        %1180 = vmatpush1.msra.mxu0 0.0
        %1181 = vmatprep.subr.mxu0 0.0
        %1182 = vmatpush1.msra.mxu0 0.0
        %1183 = vmatprep.subr.mxu0 0.0
        %1184 = vmatpush1.msra.mxu0 0.0
        %1185 = vmatprep.subr.mxu0 0.0
        %1186 = vmatpush1.msra.mxu0 0.0
        %1187 = vmatprep.subr.mxu0 0.0
        %1188 = vmatpush1.msra.mxu0 0.0
        %1189 = vmatprep.subr.mxu0 0.0
        %1190 = vmatpush1.msra.mxu0 0.0
        %1191 = vmatprep.subr.mxu0 0.0
        %1192 = vmatpush1.msra.mxu0 0.0
        %1193 = vmatprep.subr.mxu0 0.0
        %1194 = vmatpush1.msra.mxu0 0.0
        %1195 = vmatprep.subr.mxu0 0.0
        %1196 = vmatpush1.msra.mxu0 0.0
        %1197 = vmatprep.subr.mxu0 0.0
        %1198 = vmatpush1.msra.mxu0 0.0
        %1199 = vmatprep.subr.mxu0 0.0
        %1200 = vmatpush1.msra.mxu0 0.0
        %1201 = vmatprep.subr.mxu0 0.0
        %1202 = vmatpush1.msra.mxu0 0.0
        %1203 = vmatprep.subr.mxu0 0.0
        %1204 = vmatpush1.msra.mxu0 0.0
        %1205 = vmatprep.subr.mxu0 0.0
        %1206 = vmatpush1.msra.mxu0 0.0
        %1207 = vmatprep.subr.mxu0 0.0
        %1208 = vmatpush1.msra.mxu0 0.0
        %1209 = vmatprep.subr.mxu0 0.0
        %1210 = vmatpush1.msra.mxu0 0.0
        %1211 = vmatprep.subr.mxu0 0.0
        %1212 = vmatpush1.msra.mxu0 0.0
        %1213 = vmatprep.subr.mxu0 0.0
        %1214 = vmatpush1.msra.mxu0 0.0
        %1215 = vmatprep.subr.mxu0 0.0
        %1216 = vmatpush1.msra.mxu0 0.0
        %1217 = vmatprep.mubr.f32.mxu0 0.0
        %1218 = vmatmul.mubr.f32.gmra.mrb[0].mxu0 %v1055
        %v1219 = vpop.f32.mrb[0].mxu0
        %v1220 = vadd.f32 0.0, %v1219
        %v1221 = vpop.f32.mrb[0].mxu0
        %1222 = vmatprep.mubr.f32.mxu0 0.0
        %1223 = vmatmul.mubr.f32.gmra.mrb[0].mxu0 %v1058
        %v1224 = vpop.f32.mrb[0].mxu0
        %v1225 = vadd.f32 0.0, %v1224
        %v1226 = vpop.f32.mrb[0].mxu0
        %1227 = vmatprep.mubr.f32.mxu0 0.0
        %1228 = vmatmul.mubr.f32.gmra.mrb[0].mxu0 %v1061
        %v1229 = vpop.f32.mrb[0].mxu0
        %v1230 = vadd.f32 0.0, %v1229
        %v1231 = vpop.f32.mrb[0].mxu0
        %1232 = vmatprep.mubr.f32.mxu0 0.0
        %1233 = vmatmul.mubr.f32.gmra.mrb[0].mxu0 %v1064
        %v1234 = vpop.f32.mrb[0].mxu0
        %v1235 = vadd.f32 0.0, %v1234
        %v1236 = vpop.f32.mrb[0].mxu0
        %1237 = vmatprep.mubr.f32.mxu0 0.0
        %1238 = vmatmul.mubr.f32.gmra.mrb[0].mxu0 %v1067
        %v1239 = vpop.f32.mrb[0].mxu0
        %v1240 = vadd.f32 0.0, %v1239
        %v1241 = vpop.f32.mrb[0].mxu0
        %1242 = vmatprep.mubr.f32.mxu0 0.0
        %1243 = vmatmul.mubr.f32.gmra.mrb[0].mxu0 %v1070
        %v1244 = vpop.f32.mrb[0].mxu0
        %v1245 = vadd.f32 0.0, %v1244
        %v1246 = vpop.f32.mrb[0].mxu0
        %1247 = vmatprep.mubr.f32.mxu0 0.0
        %1248 = vmatmul.mubr.f32.gmra.mrb[0].mxu0 %v1073
        %v1249 = vpop.f32.mrb[0].mxu0
        %v1250 = vadd.f32 0.0, %v1249
        %v1251 = vpop.f32.mrb[0].mxu0
        %1252 = vmatprep.mubr.f32.mxu0 0.0
        %1253 = vmatmul.mubr.f32.gmra.mrb[0].mxu0 %v1076
        %v1254 = vpop.f32.mrb[0].mxu0
        %v1255 = vadd.f32 0.0, %v1254
        %v1256 = vpop.f32.mrb[0].mxu0
        %1257 = vmatprep.mubr.f32.mxu0 0.0
        %1258 = vmatmul.mubr.f32.gmra.mrb[0].mxu0 %v1079
        %v1259 = vpop.f32.mrb[0].mxu0
        %v1260 = vadd.f32 0.0, %v1259
        %v1261 = vpop.f32.mrb[0].mxu0
        %1262 = vmatprep.mubr.f32.mxu0 0.0
        %1263 = vmatmul.mubr.f32.gmra.mrb[0].mxu0 %v1082
        %v1264 = vpop.f32.mrb[0].mxu0
        %v1265 = vadd.f32 0.0, %v1264
        %v1266 = vpop.f32.mrb[0].mxu0
        %1267 = vmatprep.mubr.f32.mxu0 0.0
        %1268 = vmatmul.mubr.f32.gmra.mrb[0].mxu0 %v1085
        %v1269 = vpop.f32.mrb[0].mxu0
        %v1270 = vadd.f32 0.0, %v1269
        %v1271 = vpop.f32.mrb[0].mxu0
        %1272 = vmatprep.mubr.f32.mxu0 0.0
        %1273 = vmatmul.mubr.f32.gmra.mrb[0].mxu0 %v1088
        %v1274 = vpop.f32.mrb[0].mxu0
        %v1275 = vadd.f32 0.0, %v1274
        %v1276 = vpop.f32.mrb[0].mxu0
        %1277 = vmatprep.mubr.f32.mxu0 0.0
        %1278 = vmatmul.mubr.f32.gmra.mrb[0].mxu0 %v1091
        %v1279 = vpop.f32.mrb[0].mxu0
        %v1280 = vadd.f32 0.0, %v1279
        %v1281 = vpop.f32.mrb[0].mxu0
        %1282 = vmatprep.mubr.f32.mxu0 0.0
        %1283 = vmatmul.mubr.f32.gmra.mrb[0].mxu0 %v1094
        %v1284 = vpop.f32.mrb[0].mxu0
        %v1285 = vadd.f32 0.0, %v1284
        %v1286 = vpop.f32.mrb[0].mxu0
        %1287 = vmatprep.mubr.f32.mxu0 0.0
        %1288 = vmatmul.mubr.f32.gmra.mrb[0].mxu0 %v1097
        %v1289 = vpop.f32.mrb[0].mxu0
        %v1290 = vadd.f32 0.0, %v1289
        %v1291 = vpop.f32.mrb[0].mxu0
        %1292 = vmatprep.mubr.f32.mxu0 0.0
        %1293 = vmatmul.mubr.f32.gmra.mrb[0].mxu0 %v1100
        %v1294 = vpop.f32.mrb[0].mxu0
        %v1295 = vadd.f32 0.0, %v1294
        %v1296 = vpop.f32.mrb[0].mxu0
        %1297 = vmatprep.mubr.f32.mxu0 0.0
        %1298 = vmatmul.mubr.f32.gmra.mrb[0].mxu0 %v1103
        %v1299 = vpop.f32.mrb[0].mxu0
        %v1300 = vadd.f32 0.0, %v1299
        %v1301 = vpop.f32.mrb[0].mxu0
        %1302 = vmatprep.mubr.f32.mxu0 0.0
        %1303 = vmatmul.mubr.f32.gmra.mrb[0].mxu0 %v1106
        %v1304 = vpop.f32.mrb[0].mxu0
        %v1305 = vadd.f32 0.0, %v1304
        %v1306 = vpop.f32.mrb[0].mxu0
        %1307 = vmatprep.mubr.f32.mxu0 0.0
        %1308 = vmatmul.mubr.f32.gmra.mrb[0].mxu0 %v1109
        %v1309 = vpop.f32.mrb[0].mxu0
        %v1310 = vadd.f32 0.0, %v1309
        %v1311 = vpop.f32.mrb[0].mxu0
        %1312 = vmatprep.mubr.f32.mxu0 0.0
        %1313 = vmatmul.mubr.f32.gmra.mrb[0].mxu0 %v1112
        %v1314 = vpop.f32.mrb[0].mxu0
        %v1315 = vadd.f32 0.0, %v1314
        %v1316 = vpop.f32.mrb[0].mxu0
        %1317 = vmatprep.mubr.f32.mxu0 0.0
        %1318 = vmatmul.mubr.f32.gmra.mrb[0].mxu0 %v1115
        %v1319 = vpop.f32.mrb[0].mxu0
        %v1320 = vadd.f32 0.0, %v1319
        %v1321 = vpop.f32.mrb[0].mxu0
        %1322 = vmatprep.mubr.f32.mxu0 0.0
        %1323 = vmatmul.mubr.f32.gmra.mrb[0].mxu0 %v1118
        %v1324 = vpop.f32.mrb[0].mxu0
        %v1325 = vadd.f32 0.0, %v1324
        %v1326 = vpop.f32.mrb[0].mxu0
        %1327 = vmatprep.mubr.f32.mxu0 0.0
        %1328 = vmatmul.mubr.f32.gmra.mrb[0].mxu0 %v1121
        %v1329 = vpop.f32.mrb[0].mxu0
        %v1330 = vadd.f32 0.0, %v1329
        %v1331 = vpop.f32.mrb[0].mxu0
        %1332 = vmatprep.mubr.f32.mxu0 0.0
        %1333 = vmatmul.mubr.f32.gmra.mrb[0].mxu0 %v1124
        %v1334 = vpop.f32.mrb[0].mxu0
        %v1335 = vadd.f32 0.0, %v1334
        %v1336 = vpop.f32.mrb[0].mxu0
        %1337 = vmatprep.mubr.f32.mxu0 0.0
        %1338 = vmatmul.mubr.f32.gmra.mrb[0].mxu0 %v1127
        %v1339 = vpop.f32.mrb[0].mxu0
        %v1340 = vadd.f32 0.0, %v1339
        %v1341 = vpop.f32.mrb[0].mxu0
        %1342 = vmatprep.mubr.f32.mxu0 0.0
        %1343 = vmatmul.mubr.f32.gmra.mrb[0].mxu0 %v1130
        %v1344 = vpop.f32.mrb[0].mxu0
        %v1345 = vadd.f32 0.0, %v1344
        %v1346 = vpop.f32.mrb[0].mxu0
        %1347 = vmatprep.mubr.f32.mxu0 0.0
        %1348 = vmatmul.mubr.f32.gmra.mrb[0].mxu0 %v1133
        %v1349 = vpop.f32.mrb[0].mxu0
        %v1350 = vadd.f32 0.0, %v1349
        %v1351 = vpop.f32.mrb[0].mxu0
        %1352 = vmatprep.mubr.f32.mxu0 0.0
        %1353 = vmatmul.mubr.f32.gmra.mrb[0].mxu0 %v1136
        %v1354 = vpop.f32.mrb[0].mxu0
        %v1355 = vadd.f32 0.0, %v1354
        %v1356 = vpop.f32.mrb[0].mxu0
        %1357 = vmatprep.mubr.f32.mxu0 0.0
        %1358 = vmatmul.mubr.f32.gmra.mrb[0].mxu0 %v1139
        %v1359 = vpop.f32.mrb[0].mxu0
        %v1360 = vadd.f32 0.0, %v1359
        %v1361 = vpop.f32.mrb[0].mxu0
        %1362 = vmatprep.mubr.f32.mxu0 0.0
        %1363 = vmatmul.mubr.f32.gmra.mrb[0].mxu0 %v1142
        %v1364 = vpop.f32.mrb[0].mxu0
        %v1365 = vadd.f32 0.0, %v1364
        %v1366 = vpop.f32.mrb[0].mxu0
        %1367 = vmatprep.mubr.f32.mxu0 0.0
        %1368 = vmatmul.mubr.f32.gmra.mrb[0].mxu0 %v1145
        %v1369 = vpop.f32.mrb[0].mxu0
        %v1370 = vadd.f32 0.0, %v1369
        %v1371 = vpop.f32.mrb[0].mxu0
        %1372 = vmatprep.mubr.f32.mxu0 0.0
        %1373 = vmatmul.mubr.f32.gmra.mrb[0].mxu0 %v1148
        %v1374 = vpop.f32.mrb[0].mxu0
        %v1375 = vadd.f32 0.0, %v1374
        %v1376 = vpop.f32.mrb[0].mxu0
        %1377 = vdwg.mxu0
        %v1378 = vld [vmem:[#allocation2] sm:$0xff]
        %v1379 = vld [vmem:[#allocation2 + $0x8] sm:$0xff]
        %v1380 = vld [vmem:[#allocation2 + $0x10] sm:$0xff]
        %v1381 = vld [vmem:[#allocation2 + $0x18] sm:$0xff]
        %v1382 = vld [vmem:[#allocation2 + $0x20] sm:$0xff]
        %v1383 = vld [vmem:[#allocation2 + $0x28] sm:$0xff]
        %v1384 = vld [vmem:[#allocation2 + $0x30] sm:$0xff]
        %v1385 = vld [vmem:[#allocation2 + $0x38] sm:$0xff]
        %v1386 = vld [vmem:[#allocation2 + $0x40] sm:$0xff]
        %v1387 = vld [vmem:[#allocation2 + $0x48] sm:$0xff]
        %v1388 = vld [vmem:[#allocation2 + $0x50] sm:$0xff]
        %v1389 = vld [vmem:[#allocation2 + $0x58] sm:$0xff]
        %v1390 = vld [vmem:[#allocation2 + $0x60] sm:$0xff]
        %v1391 = vld [vmem:[#allocation2 + $0x68] sm:$0xff]
        %v1392 = vld [vmem:[#allocation2 + $0x70] sm:$0xff]
        %v1393 = vld [vmem:[#allocation2 + $0x78] sm:$0xff]
        %v1394 = vld [vmem:[#allocation2 + $0x80] sm:$0xff]
        %v1395 = vld [vmem:[#allocation2 + $0x88] sm:$0xff]
        %v1396 = vld [vmem:[#allocation2 + $0x90] sm:$0xff]
        %v1397 = vld [vmem:[#allocation2 + $0x98] sm:$0xff]
        %v1398 = vld [vmem:[#allocation2 + $0xa0] sm:$0xff]
        %v1399 = vld [vmem:[#allocation2 + $0xa8] sm:$0xff]
        %v1400 = vld [vmem:[#allocation2 + $0xb0] sm:$0xff]
        %v1401 = vld [vmem:[#allocation2 + $0xb8] sm:$0xff]
        %v1402 = vld [vmem:[#allocation2 + $0xc0] sm:$0xff]
        %v1403 = vld [vmem:[#allocation2 + $0xc8] sm:$0xff]
        %v1404 = vld [vmem:[#allocation2 + $0xd0] sm:$0xff]
        %v1405 = vld [vmem:[#allocation2 + $0xd8] sm:$0xff]
        %v1406 = vld [vmem:[#allocation2 + $0xe0] sm:$0xff]
        %v1407 = vld [vmem:[#allocation2 + $0xe8] sm:$0xff]
        %v1408 = vld [vmem:[#allocation2 + $0xf0] sm:$0xff]
        %v1409 = vld [vmem:[#allocation2 + $0xf8] sm:$0xff]
        %v1410 = vadd.f32 %v1378, %v1220
        %v1411 = vadd.f32 %v1379, %v1225
        %v1412 = vadd.f32 %v1380, %v1230
        %v1413 = vadd.f32 %v1381, %v1235
        %v1414 = vadd.f32 %v1382, %v1240
        %v1415 = vadd.f32 %v1383, %v1245
        %v1416 = vadd.f32 %v1384, %v1250
        %v1417 = vadd.f32 %v1385, %v1255
        %v1418 = vadd.f32 %v1386, %v1260
        %v1419 = vadd.f32 %v1387, %v1265
        %v1420 = vadd.f32 %v1388, %v1270
        %v1421 = vadd.f32 %v1389, %v1275
        %v1422 = vadd.f32 %v1390, %v1280
        %v1423 = vadd.f32 %v1391, %v1285
        %v1424 = vadd.f32 %v1392, %v1290
        %v1425 = vadd.f32 %v1393, %v1295
        %v1426 = vadd.f32 %v1394, %v1300
        %v1427 = vadd.f32 %v1395, %v1305
        %v1428 = vadd.f32 %v1396, %v1310
        %v1429 = vadd.f32 %v1397, %v1315
        %v1430 = vadd.f32 %v1398, %v1320
        %v1431 = vadd.f32 %v1399, %v1325
        %v1432 = vadd.f32 %v1400, %v1330
        %v1433 = vadd.f32 %v1401, %v1335
        %v1434 = vadd.f32 %v1402, %v1340
        %v1435 = vadd.f32 %v1403, %v1345
        %v1436 = vadd.f32 %v1404, %v1350
        %v1437 = vadd.f32 %v1405, %v1355
        %v1438 = vadd.f32 %v1406, %v1360
        %v1439 = vadd.f32 %v1407, %v1365
        %v1440 = vadd.f32 %v1408, %v1370
        %v1441 = vadd.f32 %v1409, %v1375
        %1442 = vst [vmem:[#allocation2] sm:$0xff] %v1410
        %1443 = vst [vmem:[#allocation2 + $0x8] sm:$0xff] %v1411
        %1444 = vst [vmem:[#allocation2 + $0x10] sm:$0xff] %v1412
        %1445 = vst [vmem:[#allocation2 + $0x18] sm:$0xff] %v1413
        %1446 = vst [vmem:[#allocation2 + $0x20] sm:$0xff] %v1414
        %1447 = vst [vmem:[#allocation2 + $0x28] sm:$0xff] %v1415
        %1448 = vst [vmem:[#allocation2 + $0x30] sm:$0xff] %v1416
        %1449 = vst [vmem:[#allocation2 + $0x38] sm:$0xff] %v1417
        %1450 = vst [vmem:[#allocation2 + $0x40] sm:$0xff] %v1418
        %1451 = vst [vmem:[#allocation2 + $0x48] sm:$0xff] %v1419
        %1452 = vst [vmem:[#allocation2 + $0x50] sm:$0xff] %v1420
        %1453 = vst [vmem:[#allocation2 + $0x58] sm:$0xff] %v1421
        %1454 = vst [vmem:[#allocation2 + $0x60] sm:$0xff] %v1422
        %1455 = vst [vmem:[#allocation2 + $0x68] sm:$0xff] %v1423
        %1456 = vst [vmem:[#allocation2 + $0x70] sm:$0xff] %v1424
        %1457 = vst [vmem:[#allocation2 + $0x78] sm:$0xff] %v1425
        %1458 = vst [vmem:[#allocation2 + $0x80] sm:$0xff] %v1426
        %1459 = vst [vmem:[#allocation2 + $0x88] sm:$0xff] %v1427
        %1460 = vst [vmem:[#allocation2 + $0x90] sm:$0xff] %v1428
        %1461 = vst [vmem:[#allocation2 + $0x98] sm:$0xff] %v1429
        %1462 = vst [vmem:[#allocation2 + $0xa0] sm:$0xff] %v1430
        %1463 = vst [vmem:[#allocation2 + $0xa8] sm:$0xff] %v1431
        %1464 = vst [vmem:[#allocation2 + $0xb0] sm:$0xff] %v1432
        %1465 = vst [vmem:[#allocation2 + $0xb8] sm:$0xff] %v1433
        %1466 = vst [vmem:[#allocation2 + $0xc0] sm:$0xff] %v1434
        %1467 = vst [vmem:[#allocation2 + $0xc8] sm:$0xff] %v1435
        %1468 = vst [vmem:[#allocation2 + $0xd0] sm:$0xff] %v1436
        %1469 = vst [vmem:[#allocation2 + $0xd8] sm:$0xff] %v1437
        %1470 = vst [vmem:[#allocation2 + $0xe0] sm:$0xff] %v1438
        %1471 = vst [vmem:[#allocation2 + $0xe8] sm:$0xff] %v1439
        %1472 = vst [vmem:[#allocation2 + $0xf0] sm:$0xff] %v1440
        %1473 = vst [vmem:[#allocation2 + $0xf8] sm:$0xff] %v1441
        %v1474 = vld [vmem:[#allocation2] sm:$0xff]
        %v1475 = vld [vmem:[#allocation2 + $0x8] sm:$0xff]
        %v1476 = vld [vmem:[#allocation2 + $0x10] sm:$0xff]
        %v1477 = vld [vmem:[#allocation2 + $0x18] sm:$0xff]
        %v1478 = vld [vmem:[#allocation2 + $0x20] sm:$0xff]
        %v1479 = vld [vmem:[#allocation2 + $0x28] sm:$0xff]
        %v1480 = vld [vmem:[#allocation2 + $0x30] sm:$0xff]
        %v1481 = vld [vmem:[#allocation2 + $0x38] sm:$0xff]
        %v1482 = vld [vmem:[#allocation2 + $0x40] sm:$0xff]
        %v1483 = vld [vmem:[#allocation2 + $0x48] sm:$0xff]
        %v1484 = vld [vmem:[#allocation2 + $0x50] sm:$0xff]
        %v1485 = vld [vmem:[#allocation2 + $0x58] sm:$0xff]
        %v1486 = vld [vmem:[#allocation2 + $0x60] sm:$0xff]
        %v1487 = vld [vmem:[#allocation2 + $0x68] sm:$0xff]
        %v1488 = vld [vmem:[#allocation2 + $0x70] sm:$0xff]
        %v1489 = vld [vmem:[#allocation2 + $0x78] sm:$0xff]
        %v1490 = vld [vmem:[#allocation2 + $0x80] sm:$0xff]
        %v1491 = vld [vmem:[#allocation2 + $0x88] sm:$0xff]
        %v1492 = vld [vmem:[#allocation2 + $0x90] sm:$0xff]
        %v1493 = vld [vmem:[#allocation2 + $0x98] sm:$0xff]
        %v1494 = vld [vmem:[#allocation2 + $0xa0] sm:$0xff]
        %v1495 = vld [vmem:[#allocation2 + $0xa8] sm:$0xff]
        %v1496 = vld [vmem:[#allocation2 + $0xb0] sm:$0xff]
        %v1497 = vld [vmem:[#allocation2 + $0xb8] sm:$0xff]
        %v1498 = vld [vmem:[#allocation2 + $0xc0] sm:$0xff]
        %v1499 = vld [vmem:[#allocation2 + $0xc8] sm:$0xff]
        %v1500 = vld [vmem:[#allocation2 + $0xd0] sm:$0xff]
        %v1501 = vld [vmem:[#allocation2 + $0xd8] sm:$0xff]
        %v1502 = vld [vmem:[#allocation2 + $0xe0] sm:$0xff]
        %v1503 = vld [vmem:[#allocation2 + $0xe8] sm:$0xff]
        %v1504 = vld [vmem:[#allocation2 + $0xf0] sm:$0xff]
        %v1505 = vld [vmem:[#allocation2 + $0xf8] sm:$0xff]
        %v1506 = vld [vmem:[%s2] sm:$0x1]
        %v1508 = vlaneseq
        %v1509 = vshrl.u32 %v1508, 7
        %v1510 = vsub.s32 0, %v1509
        %v1511 = vrot.slane %v1506, %v1510
        %v1513 = vadd.f32 %v1474, %v1511
        %v1514 = vadd.f32 %v1475, %v1511
        %v1515 = vadd.f32 %v1476, %v1511
        %v1516 = vadd.f32 %v1477, %v1511
        %v1517 = vadd.f32 %v1478, %v1511
        %v1518 = vadd.f32 %v1479, %v1511
        %v1519 = vadd.f32 %v1480, %v1511
        %v1520 = vadd.f32 %v1481, %v1511
        %v1521 = vadd.f32 %v1482, %v1511
        %v1522 = vadd.f32 %v1483, %v1511
        %v1523 = vadd.f32 %v1484, %v1511
        %v1524 = vadd.f32 %v1485, %v1511
        %v1525 = vadd.f32 %v1486, %v1511
        %v1526 = vadd.f32 %v1487, %v1511
        %v1527 = vadd.f32 %v1488, %v1511
        %v1528 = vadd.f32 %v1489, %v1511
        %v1529 = vadd.f32 %v1490, %v1511
        %v1530 = vadd.f32 %v1491, %v1511
        %v1531 = vadd.f32 %v1492, %v1511
        %v1532 = vadd.f32 %v1493, %v1511
        %v1533 = vadd.f32 %v1494, %v1511
        %v1534 = vadd.f32 %v1495, %v1511
        %v1535 = vadd.f32 %v1496, %v1511
        %v1536 = vadd.f32 %v1497, %v1511
        %v1537 = vadd.f32 %v1498, %v1511
        %v1538 = vadd.f32 %v1499, %v1511
        %v1539 = vadd.f32 %v1500, %v1511
        %v1540 = vadd.f32 %v1501, %v1511
        %v1541 = vadd.f32 %v1502, %v1511
        %v1542 = vadd.f32 %v1503, %v1511
        %v1543 = vadd.f32 %v1504, %v1511
        %v1544 = vadd.f32 %v1505, %v1511
        %v1545 = vmax.f32 %v1513, 0.0
        %v1546 = vmax.f32 %v1514, 0.0
        %v1547 = vmax.f32 %v1515, 0.0
        %v1548 = vmax.f32 %v1516, 0.0
        %v1549 = vmax.f32 %v1517, 0.0
        %v1550 = vmax.f32 %v1518, 0.0
        %v1551 = vmax.f32 %v1519, 0.0
        %v1552 = vmax.f32 %v1520, 0.0
        %v1553 = vmax.f32 %v1521, 0.0
        %v1554 = vmax.f32 %v1522, 0.0
        %v1555 = vmax.f32 %v1523, 0.0
        %v1556 = vmax.f32 %v1524, 0.0
        %v1557 = vmax.f32 %v1525, 0.0
        %v1558 = vmax.f32 %v1526, 0.0
        %v1559 = vmax.f32 %v1527, 0.0
        %v1560 = vmax.f32 %v1528, 0.0
        %v1561 = vmax.f32 %v1529, 0.0
        %v1562 = vmax.f32 %v1530, 0.0
        %v1563 = vmax.f32 %v1531, 0.0
        %v1564 = vmax.f32 %v1532, 0.0
        %v1565 = vmax.f32 %v1533, 0.0
        %v1566 = vmax.f32 %v1534, 0.0
        %v1567 = vmax.f32 %v1535, 0.0
        %v1568 = vmax.f32 %v1536, 0.0
        %v1569 = vmax.f32 %v1537, 0.0
        %v1570 = vmax.f32 %v1538, 0.0
        %v1571 = vmax.f32 %v1539, 0.0
        %v1572 = vmax.f32 %v1540, 0.0
        %v1573 = vmax.f32 %v1541, 0.0
        %v1574 = vmax.f32 %v1542, 0.0
        %v1575 = vmax.f32 %v1543, 0.0
        %v1576 = vmax.f32 %v1544, 0.0
        %1577 = vst [vmem:[%s163] sm:$0xff] %v1545
        %1578 = vst [vmem:[%s163 + $0x8] sm:$0xff] %v1546
        %1579 = vst [vmem:[%s163 + $0x10] sm:$0xff] %v1547
        %1580 = vst [vmem:[%s163 + $0x18] sm:$0xff] %v1548
        %1581 = vst [vmem:[%s163 + $0x20] sm:$0xff] %v1549
        %1582 = vst [vmem:[%s163 + $0x28] sm:$0xff] %v1550
        %1583 = vst [vmem:[%s163 + $0x30] sm:$0xff] %v1551
        %1584 = vst [vmem:[%s163 + $0x38] sm:$0xff] %v1552
        %1585 = vst [vmem:[%s163 + $0x40] sm:$0xff] %v1553
        %1586 = vst [vmem:[%s163 + $0x48] sm:$0xff] %v1554
        %1587 = vst [vmem:[%s163 + $0x50] sm:$0xff] %v1555
        %1588 = vst [vmem:[%s163 + $0x58] sm:$0xff] %v1556
        %1589 = vst [vmem:[%s163 + $0x60] sm:$0xff] %v1557
        %1590 = vst [vmem:[%s163 + $0x68] sm:$0xff] %v1558
        %1591 = vst [vmem:[%s163 + $0x70] sm:$0xff] %v1559
        %1592 = vst [vmem:[%s163 + $0x78] sm:$0xff] %v1560
        %1593 = vst [vmem:[%s163 + $0x80] sm:$0xff] %v1561
        %1594 = vst [vmem:[%s163 + $0x88] sm:$0xff] %v1562
        %1595 = vst [vmem:[%s163 + $0x90] sm:$0xff] %v1563
        %1596 = vst [vmem:[%s163 + $0x98] sm:$0xff] %v1564
        %1597 = vst [vmem:[%s163 + $0xa0] sm:$0xff] %v1565
        %1598 = vst [vmem:[%s163 + $0xa8] sm:$0xff] %v1566
        %1599 = vst [vmem:[%s163 + $0xb0] sm:$0xff] %v1567
        %1600 = vst [vmem:[%s163 + $0xb8] sm:$0xff] %v1568
        %1601 = vst [vmem:[%s163 + $0xc0] sm:$0xff] %v1569
        %1602 = vst [vmem:[%s163 + $0xc8] sm:$0xff] %v1570
        %1603 = vst [vmem:[%s163 + $0xd0] sm:$0xff] %v1571
        %1604 = vst [vmem:[%s163 + $0xd8] sm:$0xff] %v1572
        %1605 = vst [vmem:[%s163 + $0xe0] sm:$0xff] %v1573
        %1606 = vst [vmem:[%s163 + $0xe8] sm:$0xff] %v1574
        %1607 = vst [vmem:[%s163 + $0xf0] sm:$0xff] %v1575
        %1608 = vst [vmem:[%s163 + $0xf8] sm:$0xff] %v1576
        %s1609 = sand.u32 %s93, 1
        %s1610 = scalar_lea.sflag [#allocation4], %s1609
        %s1611 = sand.u32 %s93, 1
        %s1612 = smul.addr %s1611, 256
        %s1613 = scalar_lea.vmem [#allocation3], %s1612
        // Predicated region
        $region33: #{tpu_custom_call.1} parent=31 // pred_check
          %p1614 = pneg %p103
        $region34: #{tpu_custom_call.1} parent=31 // pred_check_branch
          %1616 = sbr.rel (%p1614) target = $region36
        $region35: #{tpu_custom_call.1} parent=31 // pred_region
          %s1617 = smul.u32 32, %s17
          %s1619 = ssub.s32 4096, 4096
          %1620 = vsyncadd %s1610, %s1619
          %s1621 = smul.addr %s1617, 128
          %s1622 = scalar_lea.hbm %s3, %s1621
          %s1623 = sshll.u32 %s1613, 4
          %s1624 = int_to_ptr.vmem [resolvable:$true] %s1623
          %1629 = dma.vmem_to_hbm [thread:$0]  %s1624, 4096, %s1622, %s1610, 128, 128, 8
        $region36: #{tpu_custom_call.1} parent=31 // pred_fallthru
          _
      $region32: #{tpu_custom_call.1} parent=5 // pred_fallthru
        _
      %p1630 = scmp.le.s32.totalorder 2, %s12
      // Predicated region
      $region37: #{tpu_custom_call.1} parent=5 // pred_check
        %p1631 = pneg %p1630
      $region38: #{tpu_custom_call.1} parent=5 // pred_check_branch
        %1633 = sbr.rel (%p1631) target = $region40
      $region39: #{tpu_custom_call.1} parent=5 // pred_region
        %s1634 = ssub.s32 %s12, 2
        // Predicated region
        $region41: #{tpu_custom_call.1} parent=39 // pred_check
          %p1635 = pneg %p109
        $region42: #{tpu_custom_call.1} parent=39 // pred_check_branch
          %1637 = sbr.rel (%p1635) target = $region44
        $region43: #{tpu_custom_call.1} parent=39 // pred_region
          %s1638 = sand.u32 %s94, 1
          %s1639 = scalar_lea.sflag [#allocation4], %s1638
          %s1640 = sand.u32 %s94, 1
          %s1641 = smul.addr %s1640, 256
          %s1642 = scalar_lea.vmem [#allocation3], %s1641
          %1643 = dma.done %s1639, 4096
        $region44: #{tpu_custom_call.1} parent=39 // pred_fallthru
          _
      $region40: #{tpu_custom_call.1} parent=5 // pred_fallthru
        _
    $region6: #{tpu_custom_call.1} parent=1 // loop_footer
      %s16 = sadd.s32 1, %s12
    $region7: #{tpu_custom_call.1} parent=1 // loop_footer_branch
      %11 = sbr.rel target = $region3
    $region8: #{tpu_custom_call.1} parent=1 // loop_exit
      _
    %1644 = vsyncpa [#allocation4], 1
    %s1645 = scalar_lea.sflag [#allocation4], 1
    %1646 = vsyncpa %s1645, 1

</llo_original>
